<compile_context>
chip_gen: v7x
topology: tpu7x:2x2x1
jax: 0.10.0
libtpu: 0.0.40
codegen_flags: <defaults>
</compile_context>

<pallas_src>
import functools
import math

import jax
import jax.numpy as jnp
from jax import lax
from jax.experimental import pallas as pl
from jax.experimental.pallas import tpu as pltpu


def arc_loss_kernel(y_hat_ref, xt_ref, out_ref, s_ref, m_ref, *,
                    margin, scale, total_classes, block_classes,
                    use_static_max, ragged):
    j = pl.program_id(1)
    nj = pl.num_programs(1)

    scale_f = jnp.float32(scale)

    @pl.when(j == 0)
    def _init():
        s_ref[...] = jnp.zeros(s_ref.shape, jnp.float32)
        if not use_static_max:                       # python-static branch
            m_ref[...] = jnp.full(m_ref.shape, -jnp.inf, jnp.float32)

    x = y_hat_ref[...].astype(jnp.float32)           # (TB, TC) logits tile
    z = x * scale_f                                  # raw scaled logits

    if ragged:                                       # python-static: only for C % TC != 0
        TB, TC = z.shape
        col = lax.broadcasted_iota(jnp.int32, (TB, TC), 1)
        valid = (j * block_classes + col) < total_classes
        z = jnp.where(valid, z, -jnp.inf)            # OOB lanes contribute exp(-inf)=0

    if use_static_max:
        # Static bound: every logit <= scale, so exp(z - scale) never overflows.
        s_ref[...] += jnp.sum(jnp.exp(z - scale_f), axis=-1, keepdims=True)
    else:
        # Online (flash-style) log-sum-exp for very large scales.
        m_prev = m_ref[...]
        m_new = jnp.maximum(m_prev, jnp.max(z, axis=-1, keepdims=True))
        s_ref[...] = (s_ref[...] * jnp.exp(m_prev - m_new)
                      + jnp.sum(jnp.exp(z - m_new), axis=-1, keepdims=True))
        m_ref[...] = m_new

    @pl.when(j == nj - 1)
    def _finalize():
        cos_m = jnp.float32(math.cos(margin))
        sin_m = jnp.float32(math.sin(margin))
        thresh = jnp.float32(math.cos(math.pi - margin))

        x_t = xt_ref[...]                            # (TB, 1) target cosine (gathered in wrapper)
        sin_t = jnp.sqrt(jnp.maximum(1.0 - x_t * x_t, 0.0))
        cos_tm = x_t * cos_m - sin_t * sin_m
        adj = jnp.where(x_t < thresh, x_t, cos_tm)   # keep theta if theta + m > pi

        t = adj * scale_f                            # adjusted, scaled target logit
        zt = x_t * scale_f                           # raw, scaled target logit
        m_fin = scale_f if use_static_max else m_ref[...]
        # Rank-1 correction: swap the raw target term for the margin-adjusted one.
        # adj <= x_t, so both exponents are <= 0 under either max.
        s = s_ref[...] - jnp.exp(zt - m_fin) + jnp.exp(t - m_fin)
        out_ref[...] = m_fin + jnp.log(s) - t        # per-row CE loss, (TB, 1)


def _round_up(x, m):
    return ((x + m - 1) // m) * m


def _pick_batch_tile(b, target):
    """Largest divisor of b that is <= target and a multiple of 8; falls back to b."""
    cand = min(target, b)
    while cand >= 8:
        if b % cand == 0 and cand % 8 == 0:
            return cand
        cand -= 1
    return b


def arc_loss_pallas(y_hat, y, num_class, margin, scale, *,
                    batch_tile=128, class_tile=2048):
    B, C = y_hat.shape
    assert C == num_class

    TB = _pick_batch_tile(B, batch_tile)
    TC = min(int(class_tile), _round_up(C, 128))
    n_class_tiles = pl.cdiv(C, TC)
    ragged = (C % TC) != 0
    # Static LSE bound max(logit) <= scale is safe for typical ArcFace scales
    # (worst exponent -2*scale stays well inside f32); fall back to an online
    # running max only for very large scales.
    use_static_max = float(scale) <= 80.0

    labels = y.astype(jnp.int32).reshape(B, 1)
    # Wrapper-side target gather: a tiny (B,1) column, so the kernel never does
    # per-element iota/compare/select work over the (TB, TC) tile.
    x_t = jnp.take_along_axis(y_hat, labels, axis=1).astype(jnp.float32)

    kernel = functools.partial(
        arc_loss_kernel, margin=float(margin), scale=float(scale),
        total_classes=C, block_classes=TC,
        use_static_max=use_static_max, ragged=ragged)

    per_row = pl.pallas_call(
        kernel,
        out_shape=jax.ShapeDtypeStruct((B, 1), jnp.float32),
        grid_spec=pltpu.PrefetchScalarGridSpec(
            num_scalar_prefetch=0,
            grid=(B // TB, n_class_tiles),
            in_specs=[
                pl.BlockSpec((TB, TC), lambda i, j: (i, j)),   # logits tile
                pl.BlockSpec((TB, 1), lambda i, j: (i, 0)),    # gathered target cosine
            ],
            out_specs=pl.BlockSpec((TB, 1), lambda i, j: (i, 0)),
            scratch_shapes=[pltpu.VMEM((TB, 1), jnp.float32),   # running exp-sum
                            pltpu.VMEM((TB, 1), jnp.float32)],  # running max (online path)
        ),
        compiler_params=pltpu.CompilerParams(
            dimension_semantics=("parallel", "arbitrary"),
            vmem_limit_bytes=32 * 1024 * 1024,   # safe on v5e/v6e/v7x (64 MiB phys)
        ),
        cost_estimate=pl.CostEstimate(
            flops=4 * B * C,
            transcendentals=B * C,               # one exp per element
            bytes_accessed=B * C * y_hat.dtype.itemsize + 16 * B,
        ),
    )(y_hat, x_t)

    return jnp.sum(per_row) / jnp.float32(B)


def arc_loss_ref(y_hat, y, num_class, margin, scale):
    # pure-JAX reference of the PyTorch forward (for a sanity check)
    B = y_hat.shape[0]
    x = y_hat.astype(jnp.float32)
    cos_t = x[jnp.arange(B), y]
    theta = jnp.arccos(cos_t)
    theta_m = theta + margin
    theta_m = jnp.where(theta_m > jnp.pi, theta, theta_m)
    cos_tm = jnp.cos(theta_m)
    one_hot = jax.nn.one_hot(y, num_class, dtype=jnp.float32)
    fc = x * (1.0 - one_hot) + one_hot * cos_tm[:, None]
    fc = fc * scale
    logp = jax.nn.log_softmax(fc, axis=-1)
    return -jnp.mean(logp[jnp.arange(B), y])


if __name__ == "__main__":
    MARGIN = 0.5
    SCALE = 30.0

    key = jax.random.PRNGKey(0)
    k1, k2, k3, k4 = jax.random.split(key, 4)

    # f32 path, class count a multiple of the class tile (2 class tiles)
    B, C = 128, 4096
    y_hat = jax.random.uniform(k1, (B, C), jnp.float32, minval=-0.9, maxval=0.9)
    y = jax.random.randint(k2, (B,), 0, C, dtype=jnp.int32)
    loss = arc_loss_pallas(y_hat, y, C, MARGIN, SCALE)
    jax.block_until_ready(loss)
    ref = arc_loss_ref(y_hat, y, C, MARGIN, SCALE)
    assert jnp.allclose(loss, ref, rtol=1e-4, atol=1e-4), (loss, ref)

    # bf16 path: stream bf16 from HBM, upcast inside the kernel tile
    y_hat_bf16 = y_hat.astype(jnp.bfloat16)
    loss_bf16 = arc_loss_pallas(y_hat_bf16, y, C, MARGIN, SCALE)
    jax.block_until_ready(loss_bf16)
    ref_bf16 = arc_loss_ref(y_hat_bf16.astype(jnp.float32), y, C, MARGIN, SCALE)
    assert jnp.allclose(loss_bf16, ref_bf16, rtol=1e-3, atol=1e-3), \
        (loss_bf16, ref_bf16)

    # ragged class count: exercises the cdiv grid + in-kernel -inf masking path
    B2, C2 = 64, 1000
    y_hat2 = jax.random.uniform(k3, (B2, C2), jnp.float32, minval=-0.9, maxval=0.9)
    y2 = jax.random.randint(k4, (B2,), 0, C2, dtype=jnp.int32)
    loss2 = arc_loss_pallas(y_hat2, y2, C2, MARGIN, SCALE)
    jax.block_until_ready(loss2)
    ref2 = arc_loss_ref(y_hat2, y2, C2, MARGIN, SCALE)
    assert jnp.allclose(loss2, ref2, rtol=1e-4, atol=1e-4), (loss2, ref2)

    print("KERNEL_OK")
</pallas_src>

<mosaic_0001>
module attributes {stable_mosaic.version = 11 : i64} {
  func.func @arc_loss_kernel(%arg0: i32, %arg1: i32, %arg2: memref<128x2048xf32, #tpu.memory_space<vmem>>, %arg3: memref<128x1xf32, #tpu.memory_space<vmem>>, %arg4: memref<128x1xf32, #tpu.memory_space<vmem>>, %arg5: memref<128x1xf32, #tpu.memory_space<vmem>>, %arg6: memref<128x1xf32, #tpu.memory_space<vmem>>) attributes {dimension_semantics = [#tpu.dimension_semantics<parallel>, #tpu.dimension_semantics<arbitrary>], iteration_bounds = array<i64: 1, 2>, scalar_prefetch = 0 : i64, scratch_operands = 2 : i64, tpu.core_type = #tpu.core_type<tc>, window_params = [{transform_indices = @transform_0, window_bounds = array<i64: 128, 2048>}, {transform_indices = @transform_1, window_bounds = array<i64: 128, 1>}, {transform_indices = @transform_2, window_bounds = array<i64: 128, 1>}]} {
    %c0_i32 = arith.constant 0 : i32
    %0 = arith.cmpi eq, %arg1, %c0_i32 : i32
    %1 = arith.extui %0 : i1 to i32
    %c0_i32_0 = arith.constant 0 : i32
    %2 = arith.cmpi ne, %1, %c0_i32_0 : i32
    scf.if %2 {
      %cst_10 = arith.constant 0.000000e+00 : f32
      %17 = vector.broadcast %cst_10 : f32 to vector<128x1xf32>
      %c0_11 = arith.constant 0 : index
      %c0_12 = arith.constant 0 : index
      %18 = vector.load %arg5[%c0_11, %c0_12] : memref<128x1xf32, #tpu.memory_space<vmem>>, vector<128x1xf32>
      tpu.vector_store %arg5[%c0_11, %c0_12], %17 {strides = array<i32>} : memref<128x1xf32, #tpu.memory_space<vmem>>, vector<128x1xf32>,
    } else {
    }
    %c0 = arith.constant 0 : index
    %c0_1 = arith.constant 0 : index
    %3 = vector.load %arg2[%c0, %c0_1] : memref<128x2048xf32, #tpu.memory_space<vmem>>, vector<128x2048xf32>
    %cst = arith.constant 3.000000e+01 : f32
    %4 = vector.broadcast %cst : f32 to vector<128x2048xf32>
    %5 = arith.mulf %3, %4 : vector<128x2048xf32>
    %c0_2 = arith.constant 0 : index
    %c0_3 = arith.constant 0 : index
    %6 = vector.load %arg5[%c0_2, %c0_3] : memref<128x1xf32, #tpu.memory_space<vmem>>, vector<128x1xf32>
    %cst_4 = arith.constant 3.000000e+01 : f32
    %7 = vector.broadcast %cst_4 : f32 to vector<128x2048xf32>
    %8 = arith.subf %5, %7 : vector<128x2048xf32>
    %9 = math.exp %8 : vector<128x2048xf32>
    %cst_5 = arith.constant dense<0.000000e+00> : vector<128xf32>
    %10 = vector.multi_reduction <add>, %9, %cst_5 [1] : vector<128x2048xf32> to vector<128xf32>
    %11 = vector.shape_cast %10 : vector<128xf32> to vector<128x1xf32>
    %12 = arith.addf %6, %11 : vector<128x1xf32>
    %c0_6 = arith.constant 0 : index
    %c0_7 = arith.constant 0 : index
    %13 = vector.load %arg5[%c0_6, %c0_7] : memref<128x1xf32, #tpu.memory_space<vmem>>, vector<128x1xf32>
    tpu.vector_store %arg5[%c0_6, %c0_7], %12 {strides = array<i32>} : memref<128x1xf32, #tpu.memory_space<vmem>>, vector<128x1xf32>,
    %c1_i32 = arith.constant 1 : i32
    %14 = arith.cmpi eq, %arg1, %c1_i32 : i32
    %15 = arith.extui %14 : i1 to i32
    %cst_8 = arith.constant 3.000000e+01 : f32
    %c0_i32_9 = arith.constant 0 : i32
    %16 = arith.cmpi ne, %15, %c0_i32_9 : i32
    scf.if %16 {
      %c0_10 = arith.constant 0 : index
      %c0_11 = arith.constant 0 : index
      %17 = vector.load %arg3[%c0_10, %c0_11] : memref<128x1xf32, #tpu.memory_space<vmem>>, vector<128x1xf32>
      %18 = arith.mulf %17, %17 : vector<128x1xf32>
      %cst_12 = arith.constant 1.000000e+00 : f32
      %19 = vector.broadcast %cst_12 : f32 to vector<128x1xf32>
      %20 = arith.subf %19, %18 : vector<128x1xf32>
      %cst_13 = arith.constant 0.000000e+00 : f32
      %21 = vector.broadcast %cst_13 : f32 to vector<128x1xf32>
      %22 = arith.maximumf %20, %21 : vector<128x1xf32>
      %23 = math.sqrt %22 : vector<128x1xf32>
      %cst_14 = arith.constant 0.87758255 : f32
      %24 = vector.broadcast %cst_14 : f32 to vector<128x1xf32>
      %25 = arith.mulf %17, %24 : vector<128x1xf32>
      %cst_15 = arith.constant 0.47942555 : f32
      %26 = vector.broadcast %cst_15 : f32 to vector<128x1xf32>
      %27 = arith.mulf %23, %26 : vector<128x1xf32>
      %28 = arith.subf %25, %27 : vector<128x1xf32>
      %cst_16 = arith.constant -0.87758255 : f32
      %29 = vector.broadcast %cst_16 : f32 to vector<128x1xf32>
      %30 = arith.cmpf olt, %17, %29 : vector<128x1xf32>
      %31 = arith.select %30, %17, %28 : vector<128x1xi1>, vector<128x1xf32>
      %32 = vector.broadcast %cst_8 : f32 to vector<128x1xf32>
      %33 = arith.mulf %31, %32 : vector<128x1xf32>
      %34 = vector.broadcast %cst_8 : f32 to vector<128x1xf32>
      %35 = arith.mulf %17, %34 : vector<128x1xf32>
      %c0_17 = arith.constant 0 : index
      %c0_18 = arith.constant 0 : index
      %36 = vector.load %arg5[%c0_17, %c0_18] : memref<128x1xf32, #tpu.memory_space<vmem>>, vector<128x1xf32>
      %37 = vector.broadcast %cst_8 : f32 to vector<128x1xf32>
      %38 = arith.subf %35, %37 : vector<128x1xf32>
      %39 = math.exp %38 : vector<128x1xf32>
      %40 = arith.subf %36, %39 : vector<128x1xf32>
      %41 = vector.broadcast %cst_8 : f32 to vector<128x1xf32>
      %42 = arith.subf %33, %41 : vector<128x1xf32>
      %43 = math.exp %42 : vector<128x1xf32>
      %44 = arith.addf %40, %43 : vector<128x1xf32>
      %45 = math.log %44 : vector<128x1xf32>
      %46 = vector.broadcast %cst_8 : f32 to vector<128x1xf32>
      %47 = arith.addf %46, %45 : vector<128x1xf32>
      %48 = arith.subf %47, %33 : vector<128x1xf32>
      %c0_19 = arith.constant 0 : index
      %c0_20 = arith.constant 0 : index
      %49 = vector.load %arg4[%c0_19, %c0_20] : memref<128x1xf32, #tpu.memory_space<vmem>>, vector<128x1xf32>
      tpu.vector_store %arg4[%c0_19, %c0_20], %48 {strides = array<i32>} : memref<128x1xf32, #tpu.memory_space<vmem>>, vector<128x1xf32>,
    } else {
    }
    return
  }
  func.func @transform_0(%arg0: i32, %arg1: i32) -> (i32, i32) {
    %c0_i32 = arith.constant 0 : i32
    return %arg0, %arg1 : i32, i32
  }
  func.func @transform_1(%arg0: i32, %arg1: i32) -> (i32, i32) {
    %c0_i32 = arith.constant 0 : i32
    %c0_i32_0 = arith.constant 0 : i32
    return %arg0, %c0_i32 : i32, i32
  }
  func.func @transform_2(%arg0: i32, %arg1: i32) -> (i32, i32) {
    %c0_i32 = arith.constant 0 : i32
    %c0_i32_0 = arith.constant 0 : i32
    return %arg0, %c0_i32 : i32, i32
  }
}

</mosaic_0001>

<llo_original>
// kernel: tpu_custom_call.1
$region0: #{tpu_custom_call.1}
  #allocation0 [shape = 'u32[]', space=smem, size = 0x4, offset = 0x4, fixed_abs, tag = 'smem constant byte address 0x4 - core index']
  #allocation1 [shape = 'u32[144,128]{1,0:T(1,128)}', space=vmem, size = 0x12000, scoped, tag = 'internal scratch']
  #allocation2 [shape = 'f32[128,1]{1,0:T(8,128)}', space=vmem, size = 0x10000, scoped, tag = 'scratch operand']
  #allocation3 [shape = 'f32[128,1]{1,0:T(8,128)}', space=vmem, size = 0x10000, scoped, tag = 'scratch operand']
  %s0 = inlined_call_operand.hbm [shape: f32[128,4096], index: 0, kind: input, shape index: {}]
  %s1 = inlined_call_operand.vmem [shape: f32[128,1], index: 1, kind: input, shape index: {}]
  %s2 = inlined_call_operand.vmem [shape: f32[128,1], index: 2, kind: output, shape index: {}]
  %s3 = sld [smem:[#allocation0]]
  $region53: #{tpu_custom_call.1} parent=0
    _
  %s5 = ssub.s32 1, %s3
  %s6 = scalar_select 0, %s5, %s3
  $region1: #{tpu_custom_call.1} parent=0
    #allocation4 [shape = 'u8[2097152]{0}', space=vmem, size = 0x200000, scoped, tag = 'input window, operand 0']
    #allocation5 [shape = 's32[2]{0}', space=sflag, size = 0x8, scoped, tag = 'scoped memory for tpu_custom_call.1']
    %7 = vsyncpa [#allocation5], 0
    %s8 = scalar_lea.sflag [#allocation5], 1
    %9 = vsyncpa %s8, 0
    loop: start=0, step=1, limit=4
    $region2: #{tpu_custom_call.1} parent=1 // loop_pre_header
      _
    $region3: #{tpu_custom_call.1} parent=1 // loop_header
      %s11 = sphi 0, %s15
      %p12 = scmp.ge.s32.totalorder %s11, 4
      %s18 = sphi 0, %s30
      %s19 = sphi 0, %s26
      %s20 = sphi 0, %s18
      %s21 = sphi 0, %s19
      %s22 = sphi 0, %s20
      %s23 = sphi 0, %s21
      %s35 = sphi 0, %s37
      %s38 = sphi 0, %s35
      %s39 = sphi 0, %s38
      %s55 = sphi 0, %s39
      %s61 = sphi 0, %s63
      %s64 = sphi 0, %s61
      %s65 = sphi 0, %s64
      %s81 = sphi 0, %s65
      %s87 = sphi 0, %s89
      %s90 = sphi 0, %s87
      %s91 = sphi 0, %s90
      %s107 = sphi 0, %s91
    $region4: #{tpu_custom_call.1} parent=1 // loop_header_branch
      %14 = sbr.rel (%p12) target = $region8
    $region5: #{tpu_custom_call.1} parent=1 // loop_body
      %s16 = ssub.s32 %s11, 1
      %s17 = ssub.s32 %s11, 2
      %s24 = sadd.s32 1, %s19
      %p25 = scmp.ge.s32.totalorder %s24, 2
      %s26 = scalar_select %p25, 0, %s24
      %s27 = sadd.s32 1, %s18
      %s28 = scalar_select %p25, %s27, %s18
      %p29 = scmp.ge.s32.totalorder %s28, 1
      %s30 = scalar_select %p29, 0, %s28
      %s31 = ssub.s32 %s18, %s30
      %s32 = ssub.s32 %s19, %s26
      %s33 = sor.u32 %s31, %s32
      %p34 = scmp.eq.s32.totalorder %s33, 0
      %s36 = sadd.s32 %s35, 1
      %s37 = scalar_select %p34, %s35, %s36
      %p40 = pneg %p34
      %p41 = scmp.eq.s32.totalorder %s11, 1
      %p42 = por %p40, %p41
      %p43 = scmp.ne.s32.totalorder %s35, %s38
      %p44 = scmp.eq.s32.totalorder %s11, 0
      %p45 = por %p43, %p44
      %p46 = scmp.ne.s32.totalorder %s35, %s38
      %p47 = scmp.eq.s32.totalorder %s16, 1
      %p48 = por %p46, %p47
      %p49 = scmp.ne.s32.totalorder %s38, %s39
      %p50 = scmp.eq.s32.totalorder %s16, 0
      %p51 = por %p49, %p50
      %p52 = scmp.ne.s32.totalorder %s38, %s39
      %p53 = scmp.eq.s32.totalorder %s17, 1
      %p54 = por %p52, %p53
      %p56 = scmp.ne.s32.totalorder %s39, %s55
      %p57 = scmp.eq.s32.totalorder %s17, 0
      %p58 = por %p56, %p57
      %s59 = ssub.s32 %s18, %s30
      %p60 = scmp.eq.s32.totalorder %s59, 0
      %s62 = sadd.s32 %s61, 1
      %s63 = scalar_select %p60, %s61, %s62
      %p66 = pneg %p60
      %p67 = scmp.eq.s32.totalorder %s11, 1
      %p68 = por %p66, %p67
      %p69 = scmp.ne.s32.totalorder %s61, %s64
      %p70 = scmp.eq.s32.totalorder %s11, 0
      %p71 = por %p69, %p70
      %p72 = scmp.ne.s32.totalorder %s61, %s64
      %p73 = scmp.eq.s32.totalorder %s16, 1
      %p74 = por %p72, %p73
      %p75 = scmp.ne.s32.totalorder %s64, %s65
      %p76 = scmp.eq.s32.totalorder %s16, 0
      %p77 = por %p75, %p76
      %p78 = scmp.ne.s32.totalorder %s64, %s65
      %p79 = scmp.eq.s32.totalorder %s17, 1
      %p80 = por %p78, %p79
      %p82 = scmp.ne.s32.totalorder %s65, %s81
      %p83 = scmp.eq.s32.totalorder %s17, 0
      %p84 = por %p82, %p83
      %s85 = ssub.s32 %s18, %s30
      %p86 = scmp.eq.s32.totalorder %s85, 0
      %s88 = sadd.s32 %s87, 1
      %s89 = scalar_select %p86, %s87, %s88
      %p92 = pneg %p86
      %p93 = scmp.eq.s32.totalorder %s11, 1
      %p94 = por %p92, %p93
      %p95 = scmp.ne.s32.totalorder %s87, %s90
      %p96 = scmp.eq.s32.totalorder %s11, 0
      %p97 = por %p95, %p96
      %p98 = scmp.ne.s32.totalorder %s87, %s90
      %p99 = scmp.eq.s32.totalorder %s16, 1
      %p100 = por %p98, %p99
      %p101 = scmp.ne.s32.totalorder %s90, %s91
      %p102 = scmp.eq.s32.totalorder %s16, 0
      %p103 = por %p101, %p102
      %p104 = scmp.ne.s32.totalorder %s90, %s91
      %p105 = scmp.eq.s32.totalorder %s17, 1
      %p106 = por %p104, %p105
      %p108 = scmp.ne.s32.totalorder %s91, %s107
      %p109 = scmp.eq.s32.totalorder %s17, 0
      %p110 = por %p108, %p109
      %p111 = scmp.le.s32.totalorder 1, %s11
      %p112 = scmp.lt.s32.totalorder %s11, 3
      %p113 = pnand %p111, %p112
      %p114 = pneg %p113
      // Predicated region
      $region9: #{tpu_custom_call.1} parent=5 // pred_check
        _
      $region10: #{tpu_custom_call.1} parent=5 // pred_check_branch
        %116 = sbr.rel (%p113) target = $region12
      $region11: #{tpu_custom_call.1} parent=5 // pred_region
        %s117 = ssub.s32 %s11, 1
        // Predicated region
        $region13: #{tpu_custom_call.1} parent=11 // pred_check
          %p118 = pneg %p77
        $region14: #{tpu_custom_call.1} parent=11 // pred_check_branch
          %120 = sbr.rel (%p118) target = $region16
        $region15: #{tpu_custom_call.1} parent=11 // pred_region
          %s121 = smul.u32 16, %s20
          %p122 = scmp.lt.s32.totalorder %s121, 15
          %s123 = scalar_select %p122, %s121, 15
          %s124 = smul.addr %s123, 8
          %s125 = scalar_lea.vmem %s1, %s124
          %s126 = smul.u32 16, %s20
        $region16: #{tpu_custom_call.1} parent=11 // pred_fallthru
          _
      $region12: #{tpu_custom_call.1} parent=5 // pred_fallthru
        _
      %p127 = scmp.lt.s32.totalorder %s11, 2
      // Predicated region
      $region17: #{tpu_custom_call.1} parent=5 // pred_check
        %p128 = pneg %p127
      $region18: #{tpu_custom_call.1} parent=5 // pred_check_branch
        %130 = sbr.rel (%p128) target = $region20
      $region19: #{tpu_custom_call.1} parent=5 // pred_region
        // Predicated region
        $region21: #{tpu_custom_call.1} parent=19 // pred_check
          %p131 = pneg %p45
        $region22: #{tpu_custom_call.1} parent=19 // pred_check_branch
          %133 = sbr.rel (%p131) target = $region24
        $region23: #{tpu_custom_call.1} parent=19 // pred_region
          %s134 = sand.u32 %s35, 1
          %s135 = scalar_lea.sflag [#allocation5], %s134
          %s136 = sand.u32 %s35, 1
          %s137 = smul.addr %s136, 2048
          %s138 = scalar_lea.vmem [#allocation4], %s137
          %s139 = smul.u32 16, %s18
          %s140 = smul.u32 16, %s19
          %s142 = ssub.s32 32768, 32768
          %143 = vsyncadd %s135, %s142
          %s144 = smul.addr %s139, 32
          %s145 = sadd.s32 %s140, %s144
          %s146 = smul.addr %s145, 128
          %s147 = scalar_lea.hbm %s0, %s146
          %s148 = sshll.u32 %s138, 4
          %s149 = int_to_ptr.vmem [resolvable:$true] %s148
          %154 = dma.hbm_to_vmem [thread:$0]  %s147, 32768, %s149, %s135, 4096, 2048, 128
        $region24: #{tpu_custom_call.1} parent=19 // pred_fallthru
          _
      $region20: #{tpu_custom_call.1} parent=5 // pred_fallthru
        _
      %p155 = scmp.le.s32.totalorder 1, %s11
      %p156 = scmp.lt.s32.totalorder %s11, 3
      %p157 = pnand %p155, %p156
      %p158 = pneg %p157
      // Predicated region
      $region25: #{tpu_custom_call.1} parent=5 // pred_check
        _
      $region26: #{tpu_custom_call.1} parent=5 // pred_check_branch
        %160 = sbr.rel (%p157) target = $region28
      $region27: #{tpu_custom_call.1} parent=5 // pred_region
        %s161 = ssub.s32 %s11, 1
        %s162 = sand.u32 %s38, 1
        %s163 = scalar_lea.sflag [#allocation5], %s162
        %s164 = sand.u32 %s38, 1
        %s165 = smul.addr %s164, 2048
        %s166 = scalar_lea.vmem [#allocation4], %s165
        // Predicated region
        $region29: #{tpu_custom_call.1} parent=27 // pred_check
          %p167 = pneg %p51
        $region30: #{tpu_custom_call.1} parent=27 // pred_check_branch
          %169 = sbr.rel (%p167) target = $region32
        $region31: #{tpu_custom_call.1} parent=27 // pred_region
          %170 = dma.done %s163, 32768
        $region32: #{tpu_custom_call.1} parent=27 // pred_fallthru
          _
        %s171 = sand.u32 %s38, 1
        %s172 = scalar_lea.sflag [#allocation5], %s171
        %s173 = sand.u32 %s38, 1
        %s174 = smul.addr %s173, 2048
        %s175 = scalar_lea.vmem [#allocation4], %s174
        %p176 = pneg %p51
        %p177 = pneg %p48
        %s178 = smul.u32 16, %s20
        %p179 = scmp.lt.s32.totalorder %s178, 15
        %s180 = scalar_select %p179, %s178, 15
        %s181 = smul.addr %s180, 8
        %s182 = scalar_lea.vmem %s1, %s181
        %p183 = pneg %p77
        %p184 = pneg %p74
        %p185 = pneg %p103
        %p186 = pneg %p100
        %s187 = smul.u32 16, %s20
        %p188 = scmp.lt.s32.totalorder %s187, 15
        %s189 = scalar_select %p188, %s187, 15
        %s190 = smul.addr %s189, 8
        %s191 = scalar_lea.vmem %s2, %s190
        %s192 = smul.u32 16, %s20
        %s193 = smul.u32 16, %s21
        %s194 = smul.u32 16, %s20
        %p195 = scmp.lt.s32.totalorder %s194, 15
        %s196 = scalar_select %p195, %s194, 15
        %s197 = smul.addr %s196, 8
        %s198 = scalar_lea.vmem %s1, %s197
        %s199 = smul.u32 16, %s20
        %s200 = smul.u32 16, %s20
        %p201 = scmp.lt.s32.totalorder %s200, 15
        %s202 = scalar_select %p201, %s200, 15
        %s203 = smul.addr %s202, 8
        %s204 = scalar_lea.vmem %s2, %s203
        %s205 = smul.u32 16, %s20
        %p206 = scmp.eq.s32.totalorder %s21, 0
        // Predicated region
        $region33: #{tpu_custom_call.1} parent=27 // pred_check
          %p207 = pneg %p206
        $region34: #{tpu_custom_call.1} parent=27 // pred_check_branch
          %209 = sbr.rel (%p207) target = $region36
        $region35: #{tpu_custom_call.1} parent=27 // pred_region
          %vm210 = vcmask 7168
          %211 = vst.msk [vmem:[#allocation2] sm:$0xff] %vm210, 0.0
          %212 = vst.msk [vmem:[#allocation2 + $0x8] sm:$0xff] %vm210, 0.0
          %213 = vst.msk [vmem:[#allocation2 + $0x10] sm:$0xff] %vm210, 0.0
          %214 = vst.msk [vmem:[#allocation2 + $0x18] sm:$0xff] %vm210, 0.0
          %215 = vst.msk [vmem:[#allocation2 + $0x20] sm:$0xff] %vm210, 0.0
          %216 = vst.msk [vmem:[#allocation2 + $0x28] sm:$0xff] %vm210, 0.0
          %217 = vst.msk [vmem:[#allocation2 + $0x30] sm:$0xff] %vm210, 0.0
          %218 = vst.msk [vmem:[#allocation2 + $0x38] sm:$0xff] %vm210, 0.0
          %219 = vst.msk [vmem:[#allocation2 + $0x40] sm:$0xff] %vm210, 0.0
          %220 = vst.msk [vmem:[#allocation2 + $0x48] sm:$0xff] %vm210, 0.0
          %221 = vst.msk [vmem:[#allocation2 + $0x50] sm:$0xff] %vm210, 0.0
          %222 = vst.msk [vmem:[#allocation2 + $0x58] sm:$0xff] %vm210, 0.0
          %223 = vst.msk [vmem:[#allocation2 + $0x60] sm:$0xff] %vm210, 0.0
          %224 = vst.msk [vmem:[#allocation2 + $0x68] sm:$0xff] %vm210, 0.0
          %225 = vst.msk [vmem:[#allocation2 + $0x70] sm:$0xff] %vm210, 0.0
          %226 = vst.msk [vmem:[#allocation2 + $0x78] sm:$0xff] %vm210, 0.0
        $region36: #{tpu_custom_call.1} parent=27 // pred_fallthru
          _
        %v227 = vld [vmem:[%s166] sm:$0xff]
        %v228 = vld [vmem:[%s166 + $0x8] sm:$0xff]
        %v229 = vld [vmem:[%s166 + $0x10] sm:$0xff]
        %v230 = vld [vmem:[%s166 + $0x18] sm:$0xff]
        %v231 = vld [vmem:[%s166 + $0x20] sm:$0xff]
        %v232 = vld [vmem:[%s166 + $0x28] sm:$0xff]
        %v233 = vld [vmem:[%s166 + $0x30] sm:$0xff]
        %v234 = vld [vmem:[%s166 + $0x38] sm:$0xff]
        %v235 = vld [vmem:[%s166 + $0x40] sm:$0xff]
        %v236 = vld [vmem:[%s166 + $0x48] sm:$0xff]
        %v237 = vld [vmem:[%s166 + $0x50] sm:$0xff]
        %v238 = vld [vmem:[%s166 + $0x58] sm:$0xff]
        %v239 = vld [vmem:[%s166 + $0x60] sm:$0xff]
        %v240 = vld [vmem:[%s166 + $0x68] sm:$0xff]
        %v241 = vld [vmem:[%s166 + $0x70] sm:$0xff]
        %v242 = vld [vmem:[%s166 + $0x78] sm:$0xff]
        %v243 = vld [vmem:[%s166 + $0x80] sm:$0xff]
        %v244 = vld [vmem:[%s166 + $0x88] sm:$0xff]
        %v245 = vld [vmem:[%s166 + $0x90] sm:$0xff]
        %v246 = vld [vmem:[%s166 + $0x98] sm:$0xff]
        %v247 = vld [vmem:[%s166 + $0xa0] sm:$0xff]
        %v248 = vld [vmem:[%s166 + $0xa8] sm:$0xff]
        %v249 = vld [vmem:[%s166 + $0xb0] sm:$0xff]
        %v250 = vld [vmem:[%s166 + $0xb8] sm:$0xff]
        %v251 = vld [vmem:[%s166 + $0xc0] sm:$0xff]
        %v252 = vld [vmem:[%s166 + $0xc8] sm:$0xff]
        %v253 = vld [vmem:[%s166 + $0xd0] sm:$0xff]
        %v254 = vld [vmem:[%s166 + $0xd8] sm:$0xff]
        %v255 = vld [vmem:[%s166 + $0xe0] sm:$0xff]
        %v256 = vld [vmem:[%s166 + $0xe8] sm:$0xff]
        %v257 = vld [vmem:[%s166 + $0xf0] sm:$0xff]
        %v258 = vld [vmem:[%s166 + $0xf8] sm:$0xff]
        %v259 = vld [vmem:[%s166 + $0x100] sm:$0xff]
        %v260 = vld [vmem:[%s166 + $0x108] sm:$0xff]
        %v261 = vld [vmem:[%s166 + $0x110] sm:$0xff]
        %v262 = vld [vmem:[%s166 + $0x118] sm:$0xff]
        %v263 = vld [vmem:[%s166 + $0x120] sm:$0xff]
        %v264 = vld [vmem:[%s166 + $0x128] sm:$0xff]
        %v265 = vld [vmem:[%s166 + $0x130] sm:$0xff]
        %v266 = vld [vmem:[%s166 + $0x138] sm:$0xff]
        %v267 = vld [vmem:[%s166 + $0x140] sm:$0xff]
        %v268 = vld [vmem:[%s166 + $0x148] sm:$0xff]
        %v269 = vld [vmem:[%s166 + $0x150] sm:$0xff]
        %v270 = vld [vmem:[%s166 + $0x158] sm:$0xff]
        %v271 = vld [vmem:[%s166 + $0x160] sm:$0xff]
        %v272 = vld [vmem:[%s166 + $0x168] sm:$0xff]
        %v273 = vld [vmem:[%s166 + $0x170] sm:$0xff]
        %v274 = vld [vmem:[%s166 + $0x178] sm:$0xff]
        %v275 = vld [vmem:[%s166 + $0x180] sm:$0xff]
        %v276 = vld [vmem:[%s166 + $0x188] sm:$0xff]
        %v277 = vld [vmem:[%s166 + $0x190] sm:$0xff]
        %v278 = vld [vmem:[%s166 + $0x198] sm:$0xff]
        %v279 = vld [vmem:[%s166 + $0x1a0] sm:$0xff]
        %v280 = vld [vmem:[%s166 + $0x1a8] sm:$0xff]
        %v281 = vld [vmem:[%s166 + $0x1b0] sm:$0xff]
        %v282 = vld [vmem:[%s166 + $0x1b8] sm:$0xff]
        %v283 = vld [vmem:[%s166 + $0x1c0] sm:$0xff]
        %v284 = vld [vmem:[%s166 + $0x1c8] sm:$0xff]
        %v285 = vld [vmem:[%s166 + $0x1d0] sm:$0xff]
        %v286 = vld [vmem:[%s166 + $0x1d8] sm:$0xff]
        %v287 = vld [vmem:[%s166 + $0x1e0] sm:$0xff]
        %v288 = vld [vmem:[%s166 + $0x1e8] sm:$0xff]
        %v289 = vld [vmem:[%s166 + $0x1f0] sm:$0xff]
        %v290 = vld [vmem:[%s166 + $0x1f8] sm:$0xff]
        %v291 = vld [vmem:[%s166 + $0x200] sm:$0xff]
        %v292 = vld [vmem:[%s166 + $0x208] sm:$0xff]
        %v293 = vld [vmem:[%s166 + $0x210] sm:$0xff]
        %v294 = vld [vmem:[%s166 + $0x218] sm:$0xff]
        %v295 = vld [vmem:[%s166 + $0x220] sm:$0xff]
        %v296 = vld [vmem:[%s166 + $0x228] sm:$0xff]
        %v297 = vld [vmem:[%s166 + $0x230] sm:$0xff]
        %v298 = vld [vmem:[%s166 + $0x238] sm:$0xff]
        %v299 = vld [vmem:[%s166 + $0x240] sm:$0xff]
        %v300 = vld [vmem:[%s166 + $0x248] sm:$0xff]
        %v301 = vld [vmem:[%s166 + $0x250] sm:$0xff]
        %v302 = vld [vmem:[%s166 + $0x258] sm:$0xff]
        %v303 = vld [vmem:[%s166 + $0x260] sm:$0xff]
        %v304 = vld [vmem:[%s166 + $0x268] sm:$0xff]
        %v305 = vld [vmem:[%s166 + $0x270] sm:$0xff]
        %v306 = vld [vmem:[%s166 + $0x278] sm:$0xff]
        %v307 = vld [vmem:[%s166 + $0x280] sm:$0xff]
        %v308 = vld [vmem:[%s166 + $0x288] sm:$0xff]
        %v309 = vld [vmem:[%s166 + $0x290] sm:$0xff]
        %v310 = vld [vmem:[%s166 + $0x298] sm:$0xff]
        %v311 = vld [vmem:[%s166 + $0x2a0] sm:$0xff]
        %v312 = vld [vmem:[%s166 + $0x2a8] sm:$0xff]
        %v313 = vld [vmem:[%s166 + $0x2b0] sm:$0xff]
        %v314 = vld [vmem:[%s166 + $0x2b8] sm:$0xff]
        %v315 = vld [vmem:[%s166 + $0x2c0] sm:$0xff]
        %v316 = vld [vmem:[%s166 + $0x2c8] sm:$0xff]
        %v317 = vld [vmem:[%s166 + $0x2d0] sm:$0xff]
        %v318 = vld [vmem:[%s166 + $0x2d8] sm:$0xff]
        %v319 = vld [vmem:[%s166 + $0x2e0] sm:$0xff]
        %v320 = vld [vmem:[%s166 + $0x2e8] sm:$0xff]
        %v321 = vld [vmem:[%s166 + $0x2f0] sm:$0xff]
        %v322 = vld [vmem:[%s166 + $0x2f8] sm:$0xff]
        %v323 = vld [vmem:[%s166 + $0x300] sm:$0xff]
        %v324 = vld [vmem:[%s166 + $0x308] sm:$0xff]
        %v325 = vld [vmem:[%s166 + $0x310] sm:$0xff]
        %v326 = vld [vmem:[%s166 + $0x318] sm:$0xff]
        %v327 = vld [vmem:[%s166 + $0x320] sm:$0xff]
        %v328 = vld [vmem:[%s166 + $0x328] sm:$0xff]
        %v329 = vld [vmem:[%s166 + $0x330] sm:$0xff]
        %v330 = vld [vmem:[%s166 + $0x338] sm:$0xff]
        %v331 = vld [vmem:[%s166 + $0x340] sm:$0xff]
        %v332 = vld [vmem:[%s166 + $0x348] sm:$0xff]
        %v333 = vld [vmem:[%s166 + $0x350] sm:$0xff]
        %v334 = vld [vmem:[%s166 + $0x358] sm:$0xff]
        %v335 = vld [vmem:[%s166 + $0x360] sm:$0xff]
        %v336 = vld [vmem:[%s166 + $0x368] sm:$0xff]
        %v337 = vld [vmem:[%s166 + $0x370] sm:$0xff]
        %v338 = vld [vmem:[%s166 + $0x378] sm:$0xff]
        %v339 = vld [vmem:[%s166 + $0x380] sm:$0xff]
        %v340 = vld [vmem:[%s166 + $0x388] sm:$0xff]
        %v341 = vld [vmem:[%s166 + $0x390] sm:$0xff]
        %v342 = vld [vmem:[%s166 + $0x398] sm:$0xff]
        %v343 = vld [vmem:[%s166 + $0x3a0] sm:$0xff]
        %v344 = vld [vmem:[%s166 + $0x3a8] sm:$0xff]
        %v345 = vld [vmem:[%s166 + $0x3b0] sm:$0xff]
        %v346 = vld [vmem:[%s166 + $0x3b8] sm:$0xff]
        %v347 = vld [vmem:[%s166 + $0x3c0] sm:$0xff]
        %v348 = vld [vmem:[%s166 + $0x3c8] sm:$0xff]
        %v349 = vld [vmem:[%s166 + $0x3d0] sm:$0xff]
        %v350 = vld [vmem:[%s166 + $0x3d8] sm:$0xff]
        %v351 = vld [vmem:[%s166 + $0x3e0] sm:$0xff]
        %v352 = vld [vmem:[%s166 + $0x3e8] sm:$0xff]
        %v353 = vld [vmem:[%s166 + $0x3f0] sm:$0xff]
        %v354 = vld [vmem:[%s166 + $0x3f8] sm:$0xff]
        %v355 = vld [vmem:[%s166 + $0x400] sm:$0xff]
        %v356 = vld [vmem:[%s166 + $0x408] sm:$0xff]
        %v357 = vld [vmem:[%s166 + $0x410] sm:$0xff]
        %v358 = vld [vmem:[%s166 + $0x418] sm:$0xff]
        %v359 = vld [vmem:[%s166 + $0x420] sm:$0xff]
        %v360 = vld [vmem:[%s166 + $0x428] sm:$0xff]
        %v361 = vld [vmem:[%s166 + $0x430] sm:$0xff]
        %v362 = vld [vmem:[%s166 + $0x438] sm:$0xff]
        %v363 = vld [vmem:[%s166 + $0x440] sm:$0xff]
        %v364 = vld [vmem:[%s166 + $0x448] sm:$0xff]
        %v365 = vld [vmem:[%s166 + $0x450] sm:$0xff]
        %v366 = vld [vmem:[%s166 + $0x458] sm:$0xff]
        %v367 = vld [vmem:[%s166 + $0x460] sm:$0xff]
        %v368 = vld [vmem:[%s166 + $0x468] sm:$0xff]
        %v369 = vld [vmem:[%s166 + $0x470] sm:$0xff]
        %v370 = vld [vmem:[%s166 + $0x478] sm:$0xff]
        %v371 = vld [vmem:[%s166 + $0x480] sm:$0xff]
        %v372 = vld [vmem:[%s166 + $0x488] sm:$0xff]
        %v373 = vld [vmem:[%s166 + $0x490] sm:$0xff]
        %v374 = vld [vmem:[%s166 + $0x498] sm:$0xff]
        %v375 = vld [vmem:[%s166 + $0x4a0] sm:$0xff]
        %v376 = vld [vmem:[%s166 + $0x4a8] sm:$0xff]
        %v377 = vld [vmem:[%s166 + $0x4b0] sm:$0xff]
        %v378 = vld [vmem:[%s166 + $0x4b8] sm:$0xff]
        %v379 = vld [vmem:[%s166 + $0x4c0] sm:$0xff]
        %v380 = vld [vmem:[%s166 + $0x4c8] sm:$0xff]
        %v381 = vld [vmem:[%s166 + $0x4d0] sm:$0xff]
        %v382 = vld [vmem:[%s166 + $0x4d8] sm:$0xff]
        %v383 = vld [vmem:[%s166 + $0x4e0] sm:$0xff]
        %v384 = vld [vmem:[%s166 + $0x4e8] sm:$0xff]
        %v385 = vld [vmem:[%s166 + $0x4f0] sm:$0xff]
        %v386 = vld [vmem:[%s166 + $0x4f8] sm:$0xff]
        %v387 = vld [vmem:[%s166 + $0x500] sm:$0xff]
        %v388 = vld [vmem:[%s166 + $0x508] sm:$0xff]
        %v389 = vld [vmem:[%s166 + $0x510] sm:$0xff]
        %v390 = vld [vmem:[%s166 + $0x518] sm:$0xff]
        %v391 = vld [vmem:[%s166 + $0x520] sm:$0xff]
        %v392 = vld [vmem:[%s166 + $0x528] sm:$0xff]
        %v393 = vld [vmem:[%s166 + $0x530] sm:$0xff]
        %v394 = vld [vmem:[%s166 + $0x538] sm:$0xff]
        %v395 = vld [vmem:[%s166 + $0x540] sm:$0xff]
        %v396 = vld [vmem:[%s166 + $0x548] sm:$0xff]
        %v397 = vld [vmem:[%s166 + $0x550] sm:$0xff]
        %v398 = vld [vmem:[%s166 + $0x558] sm:$0xff]
        %v399 = vld [vmem:[%s166 + $0x560] sm:$0xff]
        %v400 = vld [vmem:[%s166 + $0x568] sm:$0xff]
        %v401 = vld [vmem:[%s166 + $0x570] sm:$0xff]
        %v402 = vld [vmem:[%s166 + $0x578] sm:$0xff]
        %v403 = vld [vmem:[%s166 + $0x580] sm:$0xff]
        %v404 = vld [vmem:[%s166 + $0x588] sm:$0xff]
        %v405 = vld [vmem:[%s166 + $0x590] sm:$0xff]
        %v406 = vld [vmem:[%s166 + $0x598] sm:$0xff]
        %v407 = vld [vmem:[%s166 + $0x5a0] sm:$0xff]
        %v408 = vld [vmem:[%s166 + $0x5a8] sm:$0xff]
        %v409 = vld [vmem:[%s166 + $0x5b0] sm:$0xff]
        %v410 = vld [vmem:[%s166 + $0x5b8] sm:$0xff]
        %v411 = vld [vmem:[%s166 + $0x5c0] sm:$0xff]
        %v412 = vld [vmem:[%s166 + $0x5c8] sm:$0xff]
        %v413 = vld [vmem:[%s166 + $0x5d0] sm:$0xff]
        %v414 = vld [vmem:[%s166 + $0x5d8] sm:$0xff]
        %v415 = vld [vmem:[%s166 + $0x5e0] sm:$0xff]
        %v416 = vld [vmem:[%s166 + $0x5e8] sm:$0xff]
        %v417 = vld [vmem:[%s166 + $0x5f0] sm:$0xff]
        %v418 = vld [vmem:[%s166 + $0x5f8] sm:$0xff]
        %v419 = vld [vmem:[%s166 + $0x600] sm:$0xff]
        %v420 = vld [vmem:[%s166 + $0x608] sm:$0xff]
        %v421 = vld [vmem:[%s166 + $0x610] sm:$0xff]
        %v422 = vld [vmem:[%s166 + $0x618] sm:$0xff]
        %v423 = vld [vmem:[%s166 + $0x620] sm:$0xff]
        %v424 = vld [vmem:[%s166 + $0x628] sm:$0xff]
        %v425 = vld [vmem:[%s166 + $0x630] sm:$0xff]
        %v426 = vld [vmem:[%s166 + $0x638] sm:$0xff]
        %v427 = vld [vmem:[%s166 + $0x640] sm:$0xff]
        %v428 = vld [vmem:[%s166 + $0x648] sm:$0xff]
        %v429 = vld [vmem:[%s166 + $0x650] sm:$0xff]
        %v430 = vld [vmem:[%s166 + $0x658] sm:$0xff]
        %v431 = vld [vmem:[%s166 + $0x660] sm:$0xff]
        %v432 = vld [vmem:[%s166 + $0x668] sm:$0xff]
        %v433 = vld [vmem:[%s166 + $0x670] sm:$0xff]
        %v434 = vld [vmem:[%s166 + $0x678] sm:$0xff]
        %v435 = vld [vmem:[%s166 + $0x680] sm:$0xff]
        %v436 = vld [vmem:[%s166 + $0x688] sm:$0xff]
        %v437 = vld [vmem:[%s166 + $0x690] sm:$0xff]
        %v438 = vld [vmem:[%s166 + $0x698] sm:$0xff]
        %v439 = vld [vmem:[%s166 + $0x6a0] sm:$0xff]
        %v440 = vld [vmem:[%s166 + $0x6a8] sm:$0xff]
        %v441 = vld [vmem:[%s166 + $0x6b0] sm:$0xff]
        %v442 = vld [vmem:[%s166 + $0x6b8] sm:$0xff]
        %v443 = vld [vmem:[%s166 + $0x6c0] sm:$0xff]
        %v444 = vld [vmem:[%s166 + $0x6c8] sm:$0xff]
        %v445 = vld [vmem:[%s166 + $0x6d0] sm:$0xff]
        %v446 = vld [vmem:[%s166 + $0x6d8] sm:$0xff]
        %v447 = vld [vmem:[%s166 + $0x6e0] sm:$0xff]
        %v448 = vld [vmem:[%s166 + $0x6e8] sm:$0xff]
        %v449 = vld [vmem:[%s166 + $0x6f0] sm:$0xff]
        %v450 = vld [vmem:[%s166 + $0x6f8] sm:$0xff]
        %v451 = vld [vmem:[%s166 + $0x700] sm:$0xff]
        %v452 = vld [vmem:[%s166 + $0x708] sm:$0xff]
        %v453 = vld [vmem:[%s166 + $0x710] sm:$0xff]
        %v454 = vld [vmem:[%s166 + $0x718] sm:$0xff]
        %v455 = vld [vmem:[%s166 + $0x720] sm:$0xff]
        %v456 = vld [vmem:[%s166 + $0x728] sm:$0xff]
        %v457 = vld [vmem:[%s166 + $0x730] sm:$0xff]
        %v458 = vld [vmem:[%s166 + $0x738] sm:$0xff]
        %v459 = vld [vmem:[%s166 + $0x740] sm:$0xff]
        %v460 = vld [vmem:[%s166 + $0x748] sm:$0xff]
        %v461 = vld [vmem:[%s166 + $0x750] sm:$0xff]
        %v462 = vld [vmem:[%s166 + $0x758] sm:$0xff]
        %v463 = vld [vmem:[%s166 + $0x760] sm:$0xff]
        %v464 = vld [vmem:[%s166 + $0x768] sm:$0xff]
        %v465 = vld [vmem:[%s166 + $0x770] sm:$0xff]
        %v466 = vld [vmem:[%s166 + $0x778] sm:$0xff]
        %v467 = vld [vmem:[%s166 + $0x780] sm:$0xff]
        %v468 = vld [vmem:[%s166 + $0x788] sm:$0xff]
        %v469 = vld [vmem:[%s166 + $0x790] sm:$0xff]
        %v470 = vld [vmem:[%s166 + $0x798] sm:$0xff]
        %v471 = vld [vmem:[%s166 + $0x7a0] sm:$0xff]
        %v472 = vld [vmem:[%s166 + $0x7a8] sm:$0xff]
        %v473 = vld [vmem:[%s166 + $0x7b0] sm:$0xff]
        %v474 = vld [vmem:[%s166 + $0x7b8] sm:$0xff]
        %v475 = vld [vmem:[%s166 + $0x7c0] sm:$0xff]
        %v476 = vld [vmem:[%s166 + $0x7c8] sm:$0xff]
        %v477 = vld [vmem:[%s166 + $0x7d0] sm:$0xff]
        %v478 = vld [vmem:[%s166 + $0x7d8] sm:$0xff]
        %v479 = vld [vmem:[%s166 + $0x7e0] sm:$0xff]
        %v480 = vld [vmem:[%s166 + $0x7e8] sm:$0xff]
        %v481 = vld [vmem:[%s166 + $0x7f0] sm:$0xff]
        %v482 = vld [vmem:[%s166 + $0x7f8] sm:$0xff]
        %v483 = vmul.f32 %v227, 30.0
        %v484 = vmul.f32 %v228, 30.0
        %v485 = vmul.f32 %v229, 30.0
        %v486 = vmul.f32 %v230, 30.0
        %v487 = vmul.f32 %v231, 30.0
        %v488 = vmul.f32 %v232, 30.0
        %v489 = vmul.f32 %v233, 30.0
        %v490 = vmul.f32 %v234, 30.0
        %v491 = vmul.f32 %v235, 30.0
        %v492 = vmul.f32 %v236, 30.0
        %v493 = vmul.f32 %v237, 30.0
        %v494 = vmul.f32 %v238, 30.0
        %v495 = vmul.f32 %v239, 30.0
        %v496 = vmul.f32 %v240, 30.0
        %v497 = vmul.f32 %v241, 30.0
        %v498 = vmul.f32 %v242, 30.0
        %v499 = vmul.f32 %v243, 30.0
        %v500 = vmul.f32 %v244, 30.0
        %v501 = vmul.f32 %v245, 30.0
        %v502 = vmul.f32 %v246, 30.0
        %v503 = vmul.f32 %v247, 30.0
        %v504 = vmul.f32 %v248, 30.0
        %v505 = vmul.f32 %v249, 30.0
        %v506 = vmul.f32 %v250, 30.0
        %v507 = vmul.f32 %v251, 30.0
        %v508 = vmul.f32 %v252, 30.0
        %v509 = vmul.f32 %v253, 30.0
        %v510 = vmul.f32 %v254, 30.0
        %v511 = vmul.f32 %v255, 30.0
        %v512 = vmul.f32 %v256, 30.0
        %v513 = vmul.f32 %v257, 30.0
        %v514 = vmul.f32 %v258, 30.0
        %v515 = vmul.f32 %v259, 30.0
        %v516 = vmul.f32 %v260, 30.0
        %v517 = vmul.f32 %v261, 30.0
        %v518 = vmul.f32 %v262, 30.0
        %v519 = vmul.f32 %v263, 30.0
        %v520 = vmul.f32 %v264, 30.0
        %v521 = vmul.f32 %v265, 30.0
        %v522 = vmul.f32 %v266, 30.0
        %v523 = vmul.f32 %v267, 30.0
        %v524 = vmul.f32 %v268, 30.0
        %v525 = vmul.f32 %v269, 30.0
        %v526 = vmul.f32 %v270, 30.0
        %v527 = vmul.f32 %v271, 30.0
        %v528 = vmul.f32 %v272, 30.0
        %v529 = vmul.f32 %v273, 30.0
        %v530 = vmul.f32 %v274, 30.0
        %v531 = vmul.f32 %v275, 30.0
        %v532 = vmul.f32 %v276, 30.0
        %v533 = vmul.f32 %v277, 30.0
        %v534 = vmul.f32 %v278, 30.0
        %v535 = vmul.f32 %v279, 30.0
        %v536 = vmul.f32 %v280, 30.0
        %v537 = vmul.f32 %v281, 30.0
        %v538 = vmul.f32 %v282, 30.0
        %v539 = vmul.f32 %v283, 30.0
        %v540 = vmul.f32 %v284, 30.0
        %v541 = vmul.f32 %v285, 30.0
        %v542 = vmul.f32 %v286, 30.0
        %v543 = vmul.f32 %v287, 30.0
        %v544 = vmul.f32 %v288, 30.0
        %v545 = vmul.f32 %v289, 30.0
        %v546 = vmul.f32 %v290, 30.0
        %v547 = vmul.f32 %v291, 30.0
        %v548 = vmul.f32 %v292, 30.0
        %v549 = vmul.f32 %v293, 30.0
        %v550 = vmul.f32 %v294, 30.0
        %v551 = vmul.f32 %v295, 30.0
        %v552 = vmul.f32 %v296, 30.0
        %v553 = vmul.f32 %v297, 30.0
        %v554 = vmul.f32 %v298, 30.0
        %v555 = vmul.f32 %v299, 30.0
        %v556 = vmul.f32 %v300, 30.0
        %v557 = vmul.f32 %v301, 30.0
        %v558 = vmul.f32 %v302, 30.0
        %v559 = vmul.f32 %v303, 30.0
        %v560 = vmul.f32 %v304, 30.0
        %v561 = vmul.f32 %v305, 30.0
        %v562 = vmul.f32 %v306, 30.0
        %v563 = vmul.f32 %v307, 30.0
        %v564 = vmul.f32 %v308, 30.0
        %v565 = vmul.f32 %v309, 30.0
        %v566 = vmul.f32 %v310, 30.0
        %v567 = vmul.f32 %v311, 30.0
        %v568 = vmul.f32 %v312, 30.0
        %v569 = vmul.f32 %v313, 30.0
        %v570 = vmul.f32 %v314, 30.0
        %v571 = vmul.f32 %v315, 30.0
        %v572 = vmul.f32 %v316, 30.0
        %v573 = vmul.f32 %v317, 30.0
        %v574 = vmul.f32 %v318, 30.0
        %v575 = vmul.f32 %v319, 30.0
        %v576 = vmul.f32 %v320, 30.0
        %v577 = vmul.f32 %v321, 30.0
        %v578 = vmul.f32 %v322, 30.0
        %v579 = vmul.f32 %v323, 30.0
        %v580 = vmul.f32 %v324, 30.0
        %v581 = vmul.f32 %v325, 30.0
        %v582 = vmul.f32 %v326, 30.0
        %v583 = vmul.f32 %v327, 30.0
        %v584 = vmul.f32 %v328, 30.0
        %v585 = vmul.f32 %v329, 30.0
        %v586 = vmul.f32 %v330, 30.0
        %v587 = vmul.f32 %v331, 30.0
        %v588 = vmul.f32 %v332, 30.0
        %v589 = vmul.f32 %v333, 30.0
        %v590 = vmul.f32 %v334, 30.0
        %v591 = vmul.f32 %v335, 30.0
        %v592 = vmul.f32 %v336, 30.0
        %v593 = vmul.f32 %v337, 30.0
        %v594 = vmul.f32 %v338, 30.0
        %v595 = vmul.f32 %v339, 30.0
        %v596 = vmul.f32 %v340, 30.0
        %v597 = vmul.f32 %v341, 30.0
        %v598 = vmul.f32 %v342, 30.0
        %v599 = vmul.f32 %v343, 30.0
        %v600 = vmul.f32 %v344, 30.0
        %v601 = vmul.f32 %v345, 30.0
        %v602 = vmul.f32 %v346, 30.0
        %v603 = vmul.f32 %v347, 30.0
        %v604 = vmul.f32 %v348, 30.0
        %v605 = vmul.f32 %v349, 30.0
        %v606 = vmul.f32 %v350, 30.0
        %v607 = vmul.f32 %v351, 30.0
        %v608 = vmul.f32 %v352, 30.0
        %v609 = vmul.f32 %v353, 30.0
        %v610 = vmul.f32 %v354, 30.0
        %v611 = vmul.f32 %v355, 30.0
        %v612 = vmul.f32 %v356, 30.0
        %v613 = vmul.f32 %v357, 30.0
        %v614 = vmul.f32 %v358, 30.0
        %v615 = vmul.f32 %v359, 30.0
        %v616 = vmul.f32 %v360, 30.0
        %v617 = vmul.f32 %v361, 30.0
        %v618 = vmul.f32 %v362, 30.0
        %v619 = vmul.f32 %v363, 30.0
        %v620 = vmul.f32 %v364, 30.0
        %v621 = vmul.f32 %v365, 30.0
        %v622 = vmul.f32 %v366, 30.0
        %v623 = vmul.f32 %v367, 30.0
        %v624 = vmul.f32 %v368, 30.0
        %v625 = vmul.f32 %v369, 30.0
        %v626 = vmul.f32 %v370, 30.0
        %v627 = vmul.f32 %v371, 30.0
        %v628 = vmul.f32 %v372, 30.0
        %v629 = vmul.f32 %v373, 30.0
        %v630 = vmul.f32 %v374, 30.0
        %v631 = vmul.f32 %v375, 30.0
        %v632 = vmul.f32 %v376, 30.0
        %v633 = vmul.f32 %v377, 30.0
        %v634 = vmul.f32 %v378, 30.0
        %v635 = vmul.f32 %v379, 30.0
        %v636 = vmul.f32 %v380, 30.0
        %v637 = vmul.f32 %v381, 30.0
        %v638 = vmul.f32 %v382, 30.0
        %v639 = vmul.f32 %v383, 30.0
        %v640 = vmul.f32 %v384, 30.0
        %v641 = vmul.f32 %v385, 30.0
        %v642 = vmul.f32 %v386, 30.0
        %v643 = vmul.f32 %v387, 30.0
        %v644 = vmul.f32 %v388, 30.0
        %v645 = vmul.f32 %v389, 30.0
        %v646 = vmul.f32 %v390, 30.0
        %v647 = vmul.f32 %v391, 30.0
        %v648 = vmul.f32 %v392, 30.0
        %v649 = vmul.f32 %v393, 30.0
        %v650 = vmul.f32 %v394, 30.0
        %v651 = vmul.f32 %v395, 30.0
        %v652 = vmul.f32 %v396, 30.0
        %v653 = vmul.f32 %v397, 30.0
        %v654 = vmul.f32 %v398, 30.0
        %v655 = vmul.f32 %v399, 30.0
        %v656 = vmul.f32 %v400, 30.0
        %v657 = vmul.f32 %v401, 30.0
        %v658 = vmul.f32 %v402, 30.0
        %v659 = vmul.f32 %v403, 30.0
        %v660 = vmul.f32 %v404, 30.0
        %v661 = vmul.f32 %v405, 30.0
        %v662 = vmul.f32 %v406, 30.0
        %v663 = vmul.f32 %v407, 30.0
        %v664 = vmul.f32 %v408, 30.0
        %v665 = vmul.f32 %v409, 30.0
        %v666 = vmul.f32 %v410, 30.0
        %v667 = vmul.f32 %v411, 30.0
        %v668 = vmul.f32 %v412, 30.0
        %v669 = vmul.f32 %v413, 30.0
        %v670 = vmul.f32 %v414, 30.0
        %v671 = vmul.f32 %v415, 30.0
        %v672 = vmul.f32 %v416, 30.0
        %v673 = vmul.f32 %v417, 30.0
        %v674 = vmul.f32 %v418, 30.0
        %v675 = vmul.f32 %v419, 30.0
        %v676 = vmul.f32 %v420, 30.0
        %v677 = vmul.f32 %v421, 30.0
        %v678 = vmul.f32 %v422, 30.0
        %v679 = vmul.f32 %v423, 30.0
        %v680 = vmul.f32 %v424, 30.0
        %v681 = vmul.f32 %v425, 30.0
        %v682 = vmul.f32 %v426, 30.0
        %v683 = vmul.f32 %v427, 30.0
        %v684 = vmul.f32 %v428, 30.0
        %v685 = vmul.f32 %v429, 30.0
        %v686 = vmul.f32 %v430, 30.0
        %v687 = vmul.f32 %v431, 30.0
        %v688 = vmul.f32 %v432, 30.0
        %v689 = vmul.f32 %v433, 30.0
        %v690 = vmul.f32 %v434, 30.0
        %v691 = vmul.f32 %v435, 30.0
        %v692 = vmul.f32 %v436, 30.0
        %v693 = vmul.f32 %v437, 30.0
        %v694 = vmul.f32 %v438, 30.0
        %v695 = vmul.f32 %v439, 30.0
        %v696 = vmul.f32 %v440, 30.0
        %v697 = vmul.f32 %v441, 30.0
        %v698 = vmul.f32 %v442, 30.0
        %v699 = vmul.f32 %v443, 30.0
        %v700 = vmul.f32 %v444, 30.0
        %v701 = vmul.f32 %v445, 30.0
        %v702 = vmul.f32 %v446, 30.0
        %v703 = vmul.f32 %v447, 30.0
        %v704 = vmul.f32 %v448, 30.0
        %v705 = vmul.f32 %v449, 30.0
        %v706 = vmul.f32 %v450, 30.0
        %v707 = vmul.f32 %v451, 30.0
        %v708 = vmul.f32 %v452, 30.0
        %v709 = vmul.f32 %v453, 30.0
        %v710 = vmul.f32 %v454, 30.0
        %v711 = vmul.f32 %v455, 30.0
        %v712 = vmul.f32 %v456, 30.0
        %v713 = vmul.f32 %v457, 30.0
        %v714 = vmul.f32 %v458, 30.0
        %v715 = vmul.f32 %v459, 30.0
        %v716 = vmul.f32 %v460, 30.0
        %v717 = vmul.f32 %v461, 30.0
        %v718 = vmul.f32 %v462, 30.0
        %v719 = vmul.f32 %v463, 30.0
        %v720 = vmul.f32 %v464, 30.0
        %v721 = vmul.f32 %v465, 30.0
        %v722 = vmul.f32 %v466, 30.0
        %v723 = vmul.f32 %v467, 30.0
        %v724 = vmul.f32 %v468, 30.0
        %v725 = vmul.f32 %v469, 30.0
        %v726 = vmul.f32 %v470, 30.0
        %v727 = vmul.f32 %v471, 30.0
        %v728 = vmul.f32 %v472, 30.0
        %v729 = vmul.f32 %v473, 30.0
        %v730 = vmul.f32 %v474, 30.0
        %v731 = vmul.f32 %v475, 30.0
        %v732 = vmul.f32 %v476, 30.0
        %v733 = vmul.f32 %v477, 30.0
        %v734 = vmul.f32 %v478, 30.0
        %v735 = vmul.f32 %v479, 30.0
        %v736 = vmul.f32 %v480, 30.0
        %v737 = vmul.f32 %v481, 30.0
        %v738 = vmul.f32 %v482, 30.0
        %v739 = vld [vmem:[#allocation2] sm:$0xff]
        %v740 = vld [vmem:[#allocation2 + $0x8] sm:$0xff]
        %v741 = vld [vmem:[#allocation2 + $0x10] sm:$0xff]
        %v742 = vld [vmem:[#allocation2 + $0x18] sm:$0xff]
        %v743 = vld [vmem:[#allocation2 + $0x20] sm:$0xff]
        %v744 = vld [vmem:[#allocation2 + $0x28] sm:$0xff]
        %v745 = vld [vmem:[#allocation2 + $0x30] sm:$0xff]
        %v746 = vld [vmem:[#allocation2 + $0x38] sm:$0xff]
        %v747 = vld [vmem:[#allocation2 + $0x40] sm:$0xff]
        %v748 = vld [vmem:[#allocation2 + $0x48] sm:$0xff]
        %v749 = vld [vmem:[#allocation2 + $0x50] sm:$0xff]
        %v750 = vld [vmem:[#allocation2 + $0x58] sm:$0xff]
        %v751 = vld [vmem:[#allocation2 + $0x60] sm:$0xff]
        %v752 = vld [vmem:[#allocation2 + $0x68] sm:$0xff]
        %v753 = vld [vmem:[#allocation2 + $0x70] sm:$0xff]
        %v754 = vld [vmem:[#allocation2 + $0x78] sm:$0xff]
        %v755 = vsub.f32 %v483, 30.0
        %v756 = vsub.f32 %v484, 30.0
        %v757 = vsub.f32 %v485, 30.0
        %v758 = vsub.f32 %v486, 30.0
        %v759 = vsub.f32 %v487, 30.0
        %v760 = vsub.f32 %v488, 30.0
        %v761 = vsub.f32 %v489, 30.0
        %v762 = vsub.f32 %v490, 30.0
        %v763 = vsub.f32 %v491, 30.0
        %v764 = vsub.f32 %v492, 30.0
        %v765 = vsub.f32 %v493, 30.0
        %v766 = vsub.f32 %v494, 30.0
        %v767 = vsub.f32 %v495, 30.0
        %v768 = vsub.f32 %v496, 30.0
        %v769 = vsub.f32 %v497, 30.0
        %v770 = vsub.f32 %v498, 30.0
        %v771 = vsub.f32 %v499, 30.0
        %v772 = vsub.f32 %v500, 30.0
        %v773 = vsub.f32 %v501, 30.0
        %v774 = vsub.f32 %v502, 30.0
        %v775 = vsub.f32 %v503, 30.0
        %v776 = vsub.f32 %v504, 30.0
        %v777 = vsub.f32 %v505, 30.0
        %v778 = vsub.f32 %v506, 30.0
        %v779 = vsub.f32 %v507, 30.0
        %v780 = vsub.f32 %v508, 30.0
        %v781 = vsub.f32 %v509, 30.0
        %v782 = vsub.f32 %v510, 30.0
        %v783 = vsub.f32 %v511, 30.0
        %v784 = vsub.f32 %v512, 30.0
        %v785 = vsub.f32 %v513, 30.0
        %v786 = vsub.f32 %v514, 30.0
        %v787 = vsub.f32 %v515, 30.0
        %v788 = vsub.f32 %v516, 30.0
        %v789 = vsub.f32 %v517, 30.0
        %v790 = vsub.f32 %v518, 30.0
        %v791 = vsub.f32 %v519, 30.0
        %v792 = vsub.f32 %v520, 30.0
        %v793 = vsub.f32 %v521, 30.0
        %v794 = vsub.f32 %v522, 30.0
        %v795 = vsub.f32 %v523, 30.0
        %v796 = vsub.f32 %v524, 30.0
        %v797 = vsub.f32 %v525, 30.0
        %v798 = vsub.f32 %v526, 30.0
        %v799 = vsub.f32 %v527, 30.0
        %v800 = vsub.f32 %v528, 30.0
        %v801 = vsub.f32 %v529, 30.0
        %v802 = vsub.f32 %v530, 30.0
        %v803 = vsub.f32 %v531, 30.0
        %v804 = vsub.f32 %v532, 30.0
        %v805 = vsub.f32 %v533, 30.0
        %v806 = vsub.f32 %v534, 30.0
        %v807 = vsub.f32 %v535, 30.0
        %v808 = vsub.f32 %v536, 30.0
        %v809 = vsub.f32 %v537, 30.0
        %v810 = vsub.f32 %v538, 30.0
        %v811 = vsub.f32 %v539, 30.0
        %v812 = vsub.f32 %v540, 30.0
        %v813 = vsub.f32 %v541, 30.0
        %v814 = vsub.f32 %v542, 30.0
        %v815 = vsub.f32 %v543, 30.0
        %v816 = vsub.f32 %v544, 30.0
        %v817 = vsub.f32 %v545, 30.0
        %v818 = vsub.f32 %v546, 30.0
        %v819 = vsub.f32 %v547, 30.0
        %v820 = vsub.f32 %v548, 30.0
        %v821 = vsub.f32 %v549, 30.0
        %v822 = vsub.f32 %v550, 30.0
        %v823 = vsub.f32 %v551, 30.0
        %v824 = vsub.f32 %v552, 30.0
        %v825 = vsub.f32 %v553, 30.0
        %v826 = vsub.f32 %v554, 30.0
        %v827 = vsub.f32 %v555, 30.0
        %v828 = vsub.f32 %v556, 30.0
        %v829 = vsub.f32 %v557, 30.0
        %v830 = vsub.f32 %v558, 30.0
        %v831 = vsub.f32 %v559, 30.0
        %v832 = vsub.f32 %v560, 30.0
        %v833 = vsub.f32 %v561, 30.0
        %v834 = vsub.f32 %v562, 30.0
        %v835 = vsub.f32 %v563, 30.0
        %v836 = vsub.f32 %v564, 30.0
        %v837 = vsub.f32 %v565, 30.0
        %v838 = vsub.f32 %v566, 30.0
        %v839 = vsub.f32 %v567, 30.0
        %v840 = vsub.f32 %v568, 30.0
        %v841 = vsub.f32 %v569, 30.0
        %v842 = vsub.f32 %v570, 30.0
        %v843 = vsub.f32 %v571, 30.0
        %v844 = vsub.f32 %v572, 30.0
        %v845 = vsub.f32 %v573, 30.0
        %v846 = vsub.f32 %v574, 30.0
        %v847 = vsub.f32 %v575, 30.0
        %v848 = vsub.f32 %v576, 30.0
        %v849 = vsub.f32 %v577, 30.0
        %v850 = vsub.f32 %v578, 30.0
        %v851 = vsub.f32 %v579, 30.0
        %v852 = vsub.f32 %v580, 30.0
        %v853 = vsub.f32 %v581, 30.0
        %v854 = vsub.f32 %v582, 30.0
        %v855 = vsub.f32 %v583, 30.0
        %v856 = vsub.f32 %v584, 30.0
        %v857 = vsub.f32 %v585, 30.0
        %v858 = vsub.f32 %v586, 30.0
        %v859 = vsub.f32 %v587, 30.0
        %v860 = vsub.f32 %v588, 30.0
        %v861 = vsub.f32 %v589, 30.0
        %v862 = vsub.f32 %v590, 30.0
        %v863 = vsub.f32 %v591, 30.0
        %v864 = vsub.f32 %v592, 30.0
        %v865 = vsub.f32 %v593, 30.0
        %v866 = vsub.f32 %v594, 30.0
        %v867 = vsub.f32 %v595, 30.0
        %v868 = vsub.f32 %v596, 30.0
        %v869 = vsub.f32 %v597, 30.0
        %v870 = vsub.f32 %v598, 30.0
        %v871 = vsub.f32 %v599, 30.0
        %v872 = vsub.f32 %v600, 30.0
        %v873 = vsub.f32 %v601, 30.0
        %v874 = vsub.f32 %v602, 30.0
        %v875 = vsub.f32 %v603, 30.0
        %v876 = vsub.f32 %v604, 30.0
        %v877 = vsub.f32 %v605, 30.0
        %v878 = vsub.f32 %v606, 30.0
        %v879 = vsub.f32 %v607, 30.0
        %v880 = vsub.f32 %v608, 30.0
        %v881 = vsub.f32 %v609, 30.0
        %v882 = vsub.f32 %v610, 30.0
        %v883 = vsub.f32 %v611, 30.0
        %v884 = vsub.f32 %v612, 30.0
        %v885 = vsub.f32 %v613, 30.0
        %v886 = vsub.f32 %v614, 30.0
        %v887 = vsub.f32 %v615, 30.0
        %v888 = vsub.f32 %v616, 30.0
        %v889 = vsub.f32 %v617, 30.0
        %v890 = vsub.f32 %v618, 30.0
        %v891 = vsub.f32 %v619, 30.0
        %v892 = vsub.f32 %v620, 30.0
        %v893 = vsub.f32 %v621, 30.0
        %v894 = vsub.f32 %v622, 30.0
        %v895 = vsub.f32 %v623, 30.0
        %v896 = vsub.f32 %v624, 30.0
        %v897 = vsub.f32 %v625, 30.0
        %v898 = vsub.f32 %v626, 30.0
        %v899 = vsub.f32 %v627, 30.0
        %v900 = vsub.f32 %v628, 30.0
        %v901 = vsub.f32 %v629, 30.0
        %v902 = vsub.f32 %v630, 30.0
        %v903 = vsub.f32 %v631, 30.0
        %v904 = vsub.f32 %v632, 30.0
        %v905 = vsub.f32 %v633, 30.0
        %v906 = vsub.f32 %v634, 30.0
        %v907 = vsub.f32 %v635, 30.0
        %v908 = vsub.f32 %v636, 30.0
        %v909 = vsub.f32 %v637, 30.0
        %v910 = vsub.f32 %v638, 30.0
        %v911 = vsub.f32 %v639, 30.0
        %v912 = vsub.f32 %v640, 30.0
        %v913 = vsub.f32 %v641, 30.0
        %v914 = vsub.f32 %v642, 30.0
        %v915 = vsub.f32 %v643, 30.0
        %v916 = vsub.f32 %v644, 30.0
        %v917 = vsub.f32 %v645, 30.0
        %v918 = vsub.f32 %v646, 30.0
        %v919 = vsub.f32 %v647, 30.0
        %v920 = vsub.f32 %v648, 30.0
        %v921 = vsub.f32 %v649, 30.0
        %v922 = vsub.f32 %v650, 30.0
        %v923 = vsub.f32 %v651, 30.0
        %v924 = vsub.f32 %v652, 30.0
        %v925 = vsub.f32 %v653, 30.0
        %v926 = vsub.f32 %v654, 30.0
        %v927 = vsub.f32 %v655, 30.0
        %v928 = vsub.f32 %v656, 30.0
        %v929 = vsub.f32 %v657, 30.0
        %v930 = vsub.f32 %v658, 30.0
        %v931 = vsub.f32 %v659, 30.0
        %v932 = vsub.f32 %v660, 30.0
        %v933 = vsub.f32 %v661, 30.0
        %v934 = vsub.f32 %v662, 30.0
        %v935 = vsub.f32 %v663, 30.0
        %v936 = vsub.f32 %v664, 30.0
        %v937 = vsub.f32 %v665, 30.0
        %v938 = vsub.f32 %v666, 30.0
        %v939 = vsub.f32 %v667, 30.0
        %v940 = vsub.f32 %v668, 30.0
        %v941 = vsub.f32 %v669, 30.0
        %v942 = vsub.f32 %v670, 30.0
        %v943 = vsub.f32 %v671, 30.0
        %v944 = vsub.f32 %v672, 30.0
        %v945 = vsub.f32 %v673, 30.0
        %v946 = vsub.f32 %v674, 30.0
        %v947 = vsub.f32 %v675, 30.0
        %v948 = vsub.f32 %v676, 30.0
        %v949 = vsub.f32 %v677, 30.0
        %v950 = vsub.f32 %v678, 30.0
        %v951 = vsub.f32 %v679, 30.0
        %v952 = vsub.f32 %v680, 30.0
        %v953 = vsub.f32 %v681, 30.0
        %v954 = vsub.f32 %v682, 30.0
        %v955 = vsub.f32 %v683, 30.0
        %v956 = vsub.f32 %v684, 30.0
        %v957 = vsub.f32 %v685, 30.0
        %v958 = vsub.f32 %v686, 30.0
        %v959 = vsub.f32 %v687, 30.0
        %v960 = vsub.f32 %v688, 30.0
        %v961 = vsub.f32 %v689, 30.0
        %v962 = vsub.f32 %v690, 30.0
        %v963 = vsub.f32 %v691, 30.0
        %v964 = vsub.f32 %v692, 30.0
        %v965 = vsub.f32 %v693, 30.0
        %v966 = vsub.f32 %v694, 30.0
        %v967 = vsub.f32 %v695, 30.0
        %v968 = vsub.f32 %v696, 30.0
        %v969 = vsub.f32 %v697, 30.0
        %v970 = vsub.f32 %v698, 30.0
        %v971 = vsub.f32 %v699, 30.0
        %v972 = vsub.f32 %v700, 30.0
        %v973 = vsub.f32 %v701, 30.0
        %v974 = vsub.f32 %v702, 30.0
        %v975 = vsub.f32 %v703, 30.0
        %v976 = vsub.f32 %v704, 30.0
        %v977 = vsub.f32 %v705, 30.0
        %v978 = vsub.f32 %v706, 30.0
        %v979 = vsub.f32 %v707, 30.0
        %v980 = vsub.f32 %v708, 30.0
        %v981 = vsub.f32 %v709, 30.0
        %v982 = vsub.f32 %v710, 30.0
        %v983 = vsub.f32 %v711, 30.0
        %v984 = vsub.f32 %v712, 30.0
        %v985 = vsub.f32 %v713, 30.0
        %v986 = vsub.f32 %v714, 30.0
        %v987 = vsub.f32 %v715, 30.0
        %v988 = vsub.f32 %v716, 30.0
        %v989 = vsub.f32 %v717, 30.0
        %v990 = vsub.f32 %v718, 30.0
        %v991 = vsub.f32 %v719, 30.0
        %v992 = vsub.f32 %v720, 30.0
        %v993 = vsub.f32 %v721, 30.0
        %v994 = vsub.f32 %v722, 30.0
        %v995 = vsub.f32 %v723, 30.0
        %v996 = vsub.f32 %v724, 30.0
        %v997 = vsub.f32 %v725, 30.0
        %v998 = vsub.f32 %v726, 30.0
        %v999 = vsub.f32 %v727, 30.0
        %v1000 = vsub.f32 %v728, 30.0
        %v1001 = vsub.f32 %v729, 30.0
        %v1002 = vsub.f32 %v730, 30.0
        %v1003 = vsub.f32 %v731, 30.0
        %v1004 = vsub.f32 %v732, 30.0
        %v1005 = vsub.f32 %v733, 30.0
        %v1006 = vsub.f32 %v734, 30.0
        %v1007 = vsub.f32 %v735, 30.0
        %v1008 = vsub.f32 %v736, 30.0
        %v1009 = vsub.f32 %v737, 30.0
        %v1010 = vsub.f32 %v738, 30.0
        %v1011 = vmul.f32 %v755, 1.442695
        %v1012 = vpow.pop %v1011
        %v1013 = vmul.f32 %v756, 1.442695
        %v1014 = vpow.pop %v1013
        %v1015 = vmul.f32 %v757, 1.442695
        %v1016 = vpow.pop %v1015
        %v1017 = vmul.f32 %v758, 1.442695
        %v1018 = vpow.pop %v1017
        %v1019 = vmul.f32 %v759, 1.442695
        %v1020 = vpow.pop %v1019
        %v1021 = vmul.f32 %v760, 1.442695
        %v1022 = vpow.pop %v1021
        %v1023 = vmul.f32 %v761, 1.442695
        %v1024 = vpow.pop %v1023
        %v1025 = vmul.f32 %v762, 1.442695
        %v1026 = vpow.pop %v1025
        %v1027 = vmul.f32 %v763, 1.442695
        %v1028 = vpow.pop %v1027
        %v1029 = vmul.f32 %v764, 1.442695
        %v1030 = vpow.pop %v1029
        %v1031 = vmul.f32 %v765, 1.442695
        %v1032 = vpow.pop %v1031
        %v1033 = vmul.f32 %v766, 1.442695
        %v1034 = vpow.pop %v1033
        %v1035 = vmul.f32 %v767, 1.442695
        %v1036 = vpow.pop %v1035
        %v1037 = vmul.f32 %v768, 1.442695
        %v1038 = vpow.pop %v1037
        %v1039 = vmul.f32 %v769, 1.442695
        %v1040 = vpow.pop %v1039
        %v1041 = vmul.f32 %v770, 1.442695
        %v1042 = vpow.pop %v1041
        %v1043 = vmul.f32 %v771, 1.442695
        %v1044 = vpow.pop %v1043
        %v1045 = vmul.f32 %v772, 1.442695
        %v1046 = vpow.pop %v1045
        %v1047 = vmul.f32 %v773, 1.442695
        %v1048 = vpow.pop %v1047
        %v1049 = vmul.f32 %v774, 1.442695
        %v1050 = vpow.pop %v1049
        %v1051 = vmul.f32 %v775, 1.442695
        %v1052 = vpow.pop %v1051
        %v1053 = vmul.f32 %v776, 1.442695
        %v1054 = vpow.pop %v1053
        %v1055 = vmul.f32 %v777, 1.442695
        %v1056 = vpow.pop %v1055
        %v1057 = vmul.f32 %v778, 1.442695
        %v1058 = vpow.pop %v1057
        %v1059 = vmul.f32 %v779, 1.442695
        %v1060 = vpow.pop %v1059
        %v1061 = vmul.f32 %v780, 1.442695
        %v1062 = vpow.pop %v1061
        %v1063 = vmul.f32 %v781, 1.442695
        %v1064 = vpow.pop %v1063
        %v1065 = vmul.f32 %v782, 1.442695
        %v1066 = vpow.pop %v1065
        %v1067 = vmul.f32 %v783, 1.442695
        %v1068 = vpow.pop %v1067
        %v1069 = vmul.f32 %v784, 1.442695
        %v1070 = vpow.pop %v1069
        %v1071 = vmul.f32 %v785, 1.442695
        %v1072 = vpow.pop %v1071
        %v1073 = vmul.f32 %v786, 1.442695
        %v1074 = vpow.pop %v1073
        %v1075 = vmul.f32 %v787, 1.442695
        %v1076 = vpow.pop %v1075
        %v1077 = vmul.f32 %v788, 1.442695
        %v1078 = vpow.pop %v1077
        %v1079 = vmul.f32 %v789, 1.442695
        %v1080 = vpow.pop %v1079
        %v1081 = vmul.f32 %v790, 1.442695
        %v1082 = vpow.pop %v1081
        %v1083 = vmul.f32 %v791, 1.442695
        %v1084 = vpow.pop %v1083
        %v1085 = vmul.f32 %v792, 1.442695
        %v1086 = vpow.pop %v1085
        %v1087 = vmul.f32 %v793, 1.442695
        %v1088 = vpow.pop %v1087
        %v1089 = vmul.f32 %v794, 1.442695
        %v1090 = vpow.pop %v1089
        %v1091 = vmul.f32 %v795, 1.442695
        %v1092 = vpow.pop %v1091
        %v1093 = vmul.f32 %v796, 1.442695
        %v1094 = vpow.pop %v1093
        %v1095 = vmul.f32 %v797, 1.442695
        %v1096 = vpow.pop %v1095
        %v1097 = vmul.f32 %v798, 1.442695
        %v1098 = vpow.pop %v1097
        %v1099 = vmul.f32 %v799, 1.442695
        %v1100 = vpow.pop %v1099
        %v1101 = vmul.f32 %v800, 1.442695
        %v1102 = vpow.pop %v1101
        %v1103 = vmul.f32 %v801, 1.442695
        %v1104 = vpow.pop %v1103
        %v1105 = vmul.f32 %v802, 1.442695
        %v1106 = vpow.pop %v1105
        %v1107 = vmul.f32 %v803, 1.442695
        %v1108 = vpow.pop %v1107
        %v1109 = vmul.f32 %v804, 1.442695
        %v1110 = vpow.pop %v1109
        %v1111 = vmul.f32 %v805, 1.442695
        %v1112 = vpow.pop %v1111
        %v1113 = vmul.f32 %v806, 1.442695
        %v1114 = vpow.pop %v1113
        %v1115 = vmul.f32 %v807, 1.442695
        %v1116 = vpow.pop %v1115
        %v1117 = vmul.f32 %v808, 1.442695
        %v1118 = vpow.pop %v1117
        %v1119 = vmul.f32 %v809, 1.442695
        %v1120 = vpow.pop %v1119
        %v1121 = vmul.f32 %v810, 1.442695
        %v1122 = vpow.pop %v1121
        %v1123 = vmul.f32 %v811, 1.442695
        %v1124 = vpow.pop %v1123
        %v1125 = vmul.f32 %v812, 1.442695
        %v1126 = vpow.pop %v1125
        %v1127 = vmul.f32 %v813, 1.442695
        %v1128 = vpow.pop %v1127
        %v1129 = vmul.f32 %v814, 1.442695
        %v1130 = vpow.pop %v1129
        %v1131 = vmul.f32 %v815, 1.442695
        %v1132 = vpow.pop %v1131
        %v1133 = vmul.f32 %v816, 1.442695
        %v1134 = vpow.pop %v1133
        %v1135 = vmul.f32 %v817, 1.442695
        %v1136 = vpow.pop %v1135
        %v1137 = vmul.f32 %v818, 1.442695
        %v1138 = vpow.pop %v1137
        %v1139 = vmul.f32 %v819, 1.442695
        %v1140 = vpow.pop %v1139
        %v1141 = vmul.f32 %v820, 1.442695
        %v1142 = vpow.pop %v1141
        %v1143 = vmul.f32 %v821, 1.442695
        %v1144 = vpow.pop %v1143
        %v1145 = vmul.f32 %v822, 1.442695
        %v1146 = vpow.pop %v1145
        %v1147 = vmul.f32 %v823, 1.442695
        %v1148 = vpow.pop %v1147
        %v1149 = vmul.f32 %v824, 1.442695
        %v1150 = vpow.pop %v1149
        %v1151 = vmul.f32 %v825, 1.442695
        %v1152 = vpow.pop %v1151
        %v1153 = vmul.f32 %v826, 1.442695
        %v1154 = vpow.pop %v1153
        %v1155 = vmul.f32 %v827, 1.442695
        %v1156 = vpow.pop %v1155
        %v1157 = vmul.f32 %v828, 1.442695
        %v1158 = vpow.pop %v1157
        %v1159 = vmul.f32 %v829, 1.442695
        %v1160 = vpow.pop %v1159
        %v1161 = vmul.f32 %v830, 1.442695
        %v1162 = vpow.pop %v1161
        %v1163 = vmul.f32 %v831, 1.442695
        %v1164 = vpow.pop %v1163
        %v1165 = vmul.f32 %v832, 1.442695
        %v1166 = vpow.pop %v1165
        %v1167 = vmul.f32 %v833, 1.442695
        %v1168 = vpow.pop %v1167
        %v1169 = vmul.f32 %v834, 1.442695
        %v1170 = vpow.pop %v1169
        %v1171 = vmul.f32 %v835, 1.442695
        %v1172 = vpow.pop %v1171
        %v1173 = vmul.f32 %v836, 1.442695
        %v1174 = vpow.pop %v1173
        %v1175 = vmul.f32 %v837, 1.442695
        %v1176 = vpow.pop %v1175
        %v1177 = vmul.f32 %v838, 1.442695
        %v1178 = vpow.pop %v1177
        %v1179 = vmul.f32 %v839, 1.442695
        %v1180 = vpow.pop %v1179
        %v1181 = vmul.f32 %v840, 1.442695
        %v1182 = vpow.pop %v1181
        %v1183 = vmul.f32 %v841, 1.442695
        %v1184 = vpow.pop %v1183
        %v1185 = vmul.f32 %v842, 1.442695
        %v1186 = vpow.pop %v1185
        %v1187 = vmul.f32 %v843, 1.442695
        %v1188 = vpow.pop %v1187
        %v1189 = vmul.f32 %v844, 1.442695
        %v1190 = vpow.pop %v1189
        %v1191 = vmul.f32 %v845, 1.442695
        %v1192 = vpow.pop %v1191
        %v1193 = vmul.f32 %v846, 1.442695
        %v1194 = vpow.pop %v1193
        %v1195 = vmul.f32 %v847, 1.442695
        %v1196 = vpow.pop %v1195
        %v1197 = vmul.f32 %v848, 1.442695
        %v1198 = vpow.pop %v1197
        %v1199 = vmul.f32 %v849, 1.442695
        %v1200 = vpow.pop %v1199
        %v1201 = vmul.f32 %v850, 1.442695
        %v1202 = vpow.pop %v1201
        %v1203 = vmul.f32 %v851, 1.442695
        %v1204 = vpow.pop %v1203
        %v1205 = vmul.f32 %v852, 1.442695
        %v1206 = vpow.pop %v1205
        %v1207 = vmul.f32 %v853, 1.442695
        %v1208 = vpow.pop %v1207
        %v1209 = vmul.f32 %v854, 1.442695
        %v1210 = vpow.pop %v1209
        %v1211 = vmul.f32 %v855, 1.442695
        %v1212 = vpow.pop %v1211
        %v1213 = vmul.f32 %v856, 1.442695
        %v1214 = vpow.pop %v1213
        %v1215 = vmul.f32 %v857, 1.442695
        %v1216 = vpow.pop %v1215
        %v1217 = vmul.f32 %v858, 1.442695
        %v1218 = vpow.pop %v1217
        %v1219 = vmul.f32 %v859, 1.442695
        %v1220 = vpow.pop %v1219
        %v1221 = vmul.f32 %v860, 1.442695
        %v1222 = vpow.pop %v1221
        %v1223 = vmul.f32 %v861, 1.442695
        %v1224 = vpow.pop %v1223
        %v1225 = vmul.f32 %v862, 1.442695
        %v1226 = vpow.pop %v1225
        %v1227 = vmul.f32 %v863, 1.442695
        %v1228 = vpow.pop %v1227
        %v1229 = vmul.f32 %v864, 1.442695
        %v1230 = vpow.pop %v1229
        %v1231 = vmul.f32 %v865, 1.442695
        %v1232 = vpow.pop %v1231
        %v1233 = vmul.f32 %v866, 1.442695
        %v1234 = vpow.pop %v1233
        %v1235 = vmul.f32 %v867, 1.442695
        %v1236 = vpow.pop %v1235
        %v1237 = vmul.f32 %v868, 1.442695
        %v1238 = vpow.pop %v1237
        %v1239 = vmul.f32 %v869, 1.442695
        %v1240 = vpow.pop %v1239
        %v1241 = vmul.f32 %v870, 1.442695
        %v1242 = vpow.pop %v1241
        %v1243 = vmul.f32 %v871, 1.442695
        %v1244 = vpow.pop %v1243
        %v1245 = vmul.f32 %v872, 1.442695
        %v1246 = vpow.pop %v1245
        %v1247 = vmul.f32 %v873, 1.442695
        %v1248 = vpow.pop %v1247
        %v1249 = vmul.f32 %v874, 1.442695
        %v1250 = vpow.pop %v1249
        %v1251 = vmul.f32 %v875, 1.442695
        %v1252 = vpow.pop %v1251
        %v1253 = vmul.f32 %v876, 1.442695
        %v1254 = vpow.pop %v1253
        %v1255 = vmul.f32 %v877, 1.442695
        %v1256 = vpow.pop %v1255
        %v1257 = vmul.f32 %v878, 1.442695
        %v1258 = vpow.pop %v1257
        %v1259 = vmul.f32 %v879, 1.442695
        %v1260 = vpow.pop %v1259
        %v1261 = vmul.f32 %v880, 1.442695
        %v1262 = vpow.pop %v1261
        %v1263 = vmul.f32 %v881, 1.442695
        %v1264 = vpow.pop %v1263
        %v1265 = vmul.f32 %v882, 1.442695
        %v1266 = vpow.pop %v1265
        %v1267 = vmul.f32 %v883, 1.442695
        %v1268 = vpow.pop %v1267
        %v1269 = vmul.f32 %v884, 1.442695
        %v1270 = vpow.pop %v1269
        %v1271 = vmul.f32 %v885, 1.442695
        %v1272 = vpow.pop %v1271
        %v1273 = vmul.f32 %v886, 1.442695
        %v1274 = vpow.pop %v1273
        %v1275 = vmul.f32 %v887, 1.442695
        %v1276 = vpow.pop %v1275
        %v1277 = vmul.f32 %v888, 1.442695
        %v1278 = vpow.pop %v1277
        %v1279 = vmul.f32 %v889, 1.442695
        %v1280 = vpow.pop %v1279
        %v1281 = vmul.f32 %v890, 1.442695
        %v1282 = vpow.pop %v1281
        %v1283 = vmul.f32 %v891, 1.442695
        %v1284 = vpow.pop %v1283
        %v1285 = vmul.f32 %v892, 1.442695
        %v1286 = vpow.pop %v1285
        %v1287 = vmul.f32 %v893, 1.442695
        %v1288 = vpow.pop %v1287
        %v1289 = vmul.f32 %v894, 1.442695
        %v1290 = vpow.pop %v1289
        %v1291 = vmul.f32 %v895, 1.442695
        %v1292 = vpow.pop %v1291
        %v1293 = vmul.f32 %v896, 1.442695
        %v1294 = vpow.pop %v1293
        %v1295 = vmul.f32 %v897, 1.442695
        %v1296 = vpow.pop %v1295
        %v1297 = vmul.f32 %v898, 1.442695
        %v1298 = vpow.pop %v1297
        %v1299 = vmul.f32 %v899, 1.442695
        %v1300 = vpow.pop %v1299
        %v1301 = vmul.f32 %v900, 1.442695
        %v1302 = vpow.pop %v1301
        %v1303 = vmul.f32 %v901, 1.442695
        %v1304 = vpow.pop %v1303
        %v1305 = vmul.f32 %v902, 1.442695
        %v1306 = vpow.pop %v1305
        %v1307 = vmul.f32 %v903, 1.442695
        %v1308 = vpow.pop %v1307
        %v1309 = vmul.f32 %v904, 1.442695
        %v1310 = vpow.pop %v1309
        %v1311 = vmul.f32 %v905, 1.442695
        %v1312 = vpow.pop %v1311
        %v1313 = vmul.f32 %v906, 1.442695
        %v1314 = vpow.pop %v1313
        %v1315 = vmul.f32 %v907, 1.442695
        %v1316 = vpow.pop %v1315
        %v1317 = vmul.f32 %v908, 1.442695
        %v1318 = vpow.pop %v1317
        %v1319 = vmul.f32 %v909, 1.442695
        %v1320 = vpow.pop %v1319
        %v1321 = vmul.f32 %v910, 1.442695
        %v1322 = vpow.pop %v1321
        %v1323 = vmul.f32 %v911, 1.442695
        %v1324 = vpow.pop %v1323
        %v1325 = vmul.f32 %v912, 1.442695
        %v1326 = vpow.pop %v1325
        %v1327 = vmul.f32 %v913, 1.442695
        %v1328 = vpow.pop %v1327
        %v1329 = vmul.f32 %v914, 1.442695
        %v1330 = vpow.pop %v1329
        %v1331 = vmul.f32 %v915, 1.442695
        %v1332 = vpow.pop %v1331
        %v1333 = vmul.f32 %v916, 1.442695
        %v1334 = vpow.pop %v1333
        %v1335 = vmul.f32 %v917, 1.442695
        %v1336 = vpow.pop %v1335
        %v1337 = vmul.f32 %v918, 1.442695
        %v1338 = vpow.pop %v1337
        %v1339 = vmul.f32 %v919, 1.442695
        %v1340 = vpow.pop %v1339
        %v1341 = vmul.f32 %v920, 1.442695
        %v1342 = vpow.pop %v1341
        %v1343 = vmul.f32 %v921, 1.442695
        %v1344 = vpow.pop %v1343
        %v1345 = vmul.f32 %v922, 1.442695
        %v1346 = vpow.pop %v1345
        %v1347 = vmul.f32 %v923, 1.442695
        %v1348 = vpow.pop %v1347
        %v1349 = vmul.f32 %v924, 1.442695
        %v1350 = vpow.pop %v1349
        %v1351 = vmul.f32 %v925, 1.442695
        %v1352 = vpow.pop %v1351
        %v1353 = vmul.f32 %v926, 1.442695
        %v1354 = vpow.pop %v1353
        %v1355 = vmul.f32 %v927, 1.442695
        %v1356 = vpow.pop %v1355
        %v1357 = vmul.f32 %v928, 1.442695
        %v1358 = vpow.pop %v1357
        %v1359 = vmul.f32 %v929, 1.442695
        %v1360 = vpow.pop %v1359
        %v1361 = vmul.f32 %v930, 1.442695
        %v1362 = vpow.pop %v1361
        %v1363 = vmul.f32 %v931, 1.442695
        %v1364 = vpow.pop %v1363
        %v1365 = vmul.f32 %v932, 1.442695
        %v1366 = vpow.pop %v1365
        %v1367 = vmul.f32 %v933, 1.442695
        %v1368 = vpow.pop %v1367
        %v1369 = vmul.f32 %v934, 1.442695
        %v1370 = vpow.pop %v1369
        %v1371 = vmul.f32 %v935, 1.442695
        %v1372 = vpow.pop %v1371
        %v1373 = vmul.f32 %v936, 1.442695
        %v1374 = vpow.pop %v1373
        %v1375 = vmul.f32 %v937, 1.442695
        %v1376 = vpow.pop %v1375
        %v1377 = vmul.f32 %v938, 1.442695
        %v1378 = vpow.pop %v1377
        %v1379 = vmul.f32 %v939, 1.442695
        %v1380 = vpow.pop %v1379
        %v1381 = vmul.f32 %v940, 1.442695
        %v1382 = vpow.pop %v1381
        %v1383 = vmul.f32 %v941, 1.442695
        %v1384 = vpow.pop %v1383
        %v1385 = vmul.f32 %v942, 1.442695
        %v1386 = vpow.pop %v1385
        %v1387 = vmul.f32 %v943, 1.442695
        %v1388 = vpow.pop %v1387
        %v1389 = vmul.f32 %v944, 1.442695
        %v1390 = vpow.pop %v1389
        %v1391 = vmul.f32 %v945, 1.442695
        %v1392 = vpow.pop %v1391
        %v1393 = vmul.f32 %v946, 1.442695
        %v1394 = vpow.pop %v1393
        %v1395 = vmul.f32 %v947, 1.442695
        %v1396 = vpow.pop %v1395
        %v1397 = vmul.f32 %v948, 1.442695
        %v1398 = vpow.pop %v1397
        %v1399 = vmul.f32 %v949, 1.442695
        %v1400 = vpow.pop %v1399
        %v1401 = vmul.f32 %v950, 1.442695
        %v1402 = vpow.pop %v1401
        %v1403 = vmul.f32 %v951, 1.442695
        %v1404 = vpow.pop %v1403
        %v1405 = vmul.f32 %v952, 1.442695
        %v1406 = vpow.pop %v1405
        %v1407 = vmul.f32 %v953, 1.442695
        %v1408 = vpow.pop %v1407
        %v1409 = vmul.f32 %v954, 1.442695
        %v1410 = vpow.pop %v1409
        %v1411 = vmul.f32 %v955, 1.442695
        %v1412 = vpow.pop %v1411
        %v1413 = vmul.f32 %v956, 1.442695
        %v1414 = vpow.pop %v1413
        %v1415 = vmul.f32 %v957, 1.442695
        %v1416 = vpow.pop %v1415
        %v1417 = vmul.f32 %v958, 1.442695
        %v1418 = vpow.pop %v1417
        %v1419 = vmul.f32 %v959, 1.442695
        %v1420 = vpow.pop %v1419
        %v1421 = vmul.f32 %v960, 1.442695
        %v1422 = vpow.pop %v1421
        %v1423 = vmul.f32 %v961, 1.442695
        %v1424 = vpow.pop %v1423
        %v1425 = vmul.f32 %v962, 1.442695
        %v1426 = vpow.pop %v1425
        %v1427 = vmul.f32 %v963, 1.442695
        %v1428 = vpow.pop %v1427
        %v1429 = vmul.f32 %v964, 1.442695
        %v1430 = vpow.pop %v1429
        %v1431 = vmul.f32 %v965, 1.442695
        %v1432 = vpow.pop %v1431
        %v1433 = vmul.f32 %v966, 1.442695
        %v1434 = vpow.pop %v1433
        %v1435 = vmul.f32 %v967, 1.442695
        %v1436 = vpow.pop %v1435
        %v1437 = vmul.f32 %v968, 1.442695
        %v1438 = vpow.pop %v1437
        %v1439 = vmul.f32 %v969, 1.442695
        %v1440 = vpow.pop %v1439
        %v1441 = vmul.f32 %v970, 1.442695
        %v1442 = vpow.pop %v1441
        %v1443 = vmul.f32 %v971, 1.442695
        %v1444 = vpow.pop %v1443
        %v1445 = vmul.f32 %v972, 1.442695
        %v1446 = vpow.pop %v1445
        %v1447 = vmul.f32 %v973, 1.442695
        %v1448 = vpow.pop %v1447
        %v1449 = vmul.f32 %v974, 1.442695
        %v1450 = vpow.pop %v1449
        %v1451 = vmul.f32 %v975, 1.442695
        %v1452 = vpow.pop %v1451
        %v1453 = vmul.f32 %v976, 1.442695
        %v1454 = vpow.pop %v1453
        %v1455 = vmul.f32 %v977, 1.442695
        %v1456 = vpow.pop %v1455
        %v1457 = vmul.f32 %v978, 1.442695
        %v1458 = vpow.pop %v1457
        %v1459 = vmul.f32 %v979, 1.442695
        %v1460 = vpow.pop %v1459
        %v1461 = vmul.f32 %v980, 1.442695
        %v1462 = vpow.pop %v1461
        %v1463 = vmul.f32 %v981, 1.442695
        %v1464 = vpow.pop %v1463
        %v1465 = vmul.f32 %v982, 1.442695
        %v1466 = vpow.pop %v1465
        %v1467 = vmul.f32 %v983, 1.442695
        %v1468 = vpow.pop %v1467
        %v1469 = vmul.f32 %v984, 1.442695
        %v1470 = vpow.pop %v1469
        %v1471 = vmul.f32 %v985, 1.442695
        %v1472 = vpow.pop %v1471
        %v1473 = vmul.f32 %v986, 1.442695
        %v1474 = vpow.pop %v1473
        %v1475 = vmul.f32 %v987, 1.442695
        %v1476 = vpow.pop %v1475
        %v1477 = vmul.f32 %v988, 1.442695
        %v1478 = vpow.pop %v1477
        %v1479 = vmul.f32 %v989, 1.442695
        %v1480 = vpow.pop %v1479
        %v1481 = vmul.f32 %v990, 1.442695
        %v1482 = vpow.pop %v1481
        %v1483 = vmul.f32 %v991, 1.442695
        %v1484 = vpow.pop %v1483
        %v1485 = vmul.f32 %v992, 1.442695
        %v1486 = vpow.pop %v1485
        %v1487 = vmul.f32 %v993, 1.442695
        %v1488 = vpow.pop %v1487
        %v1489 = vmul.f32 %v994, 1.442695
        %v1490 = vpow.pop %v1489
        %v1491 = vmul.f32 %v995, 1.442695
        %v1492 = vpow.pop %v1491
        %v1493 = vmul.f32 %v996, 1.442695
        %v1494 = vpow.pop %v1493
        %v1495 = vmul.f32 %v997, 1.442695
        %v1496 = vpow.pop %v1495
        %v1497 = vmul.f32 %v998, 1.442695
        %v1498 = vpow.pop %v1497
        %v1499 = vmul.f32 %v999, 1.442695
        %v1500 = vpow.pop %v1499
        %v1501 = vmul.f32 %v1000, 1.442695
        %v1502 = vpow.pop %v1501
        %v1503 = vmul.f32 %v1001, 1.442695
        %v1504 = vpow.pop %v1503
        %v1505 = vmul.f32 %v1002, 1.442695
        %v1506 = vpow.pop %v1505
        %v1507 = vmul.f32 %v1003, 1.442695
        %v1508 = vpow.pop %v1507
        %v1509 = vmul.f32 %v1004, 1.442695
        %v1510 = vpow.pop %v1509
        %v1511 = vmul.f32 %v1005, 1.442695
        %v1512 = vpow.pop %v1511
        %v1513 = vmul.f32 %v1006, 1.442695
        %v1514 = vpow.pop %v1513
        %v1515 = vmul.f32 %v1007, 1.442695
        %v1516 = vpow.pop %v1515
        %v1517 = vmul.f32 %v1008, 1.442695
        %v1518 = vpow.pop %v1517
        %v1519 = vmul.f32 %v1009, 1.442695
        %v1520 = vpow.pop %v1519
        %v1521 = vmul.f32 %v1010, 1.442695
        %v1522 = vpow.pop %v1521
        %v1523 = vadd.f32 %v1012, %v1014
        %v1524 = vadd.f32 %v1523, %v1016
        %v1525 = vadd.f32 %v1524, %v1018
        %v1526 = vadd.f32 %v1525, %v1020
        %v1527 = vadd.f32 %v1526, %v1022
        %v1528 = vadd.f32 %v1527, %v1024
        %v1529 = vadd.f32 %v1528, %v1026
        %v1530 = vadd.f32 %v1529, %v1028
        %v1531 = vadd.f32 %v1530, %v1030
        %v1532 = vadd.f32 %v1531, %v1032
        %v1533 = vadd.f32 %v1532, %v1034
        %v1534 = vadd.f32 %v1533, %v1036
        %v1535 = vadd.f32 %v1534, %v1038
        %v1536 = vadd.f32 %v1535, %v1040
        %v1537 = vadd.f32 %v1536, %v1042
        %1538 = vadd.xlane.f32.xlu0 %v1537
        %v1539 = vpop.xlane.xlu0 %1538
        %v1540 = vadd.f32 %v1044, %v1046
        %v1541 = vadd.f32 %v1540, %v1048
        %v1542 = vadd.f32 %v1541, %v1050
        %v1543 = vadd.f32 %v1542, %v1052
        %v1544 = vadd.f32 %v1543, %v1054
        %v1545 = vadd.f32 %v1544, %v1056
        %v1546 = vadd.f32 %v1545, %v1058
        %v1547 = vadd.f32 %v1546, %v1060
        %v1548 = vadd.f32 %v1547, %v1062
        %v1549 = vadd.f32 %v1548, %v1064
        %v1550 = vadd.f32 %v1549, %v1066
        %v1551 = vadd.f32 %v1550, %v1068
        %v1552 = vadd.f32 %v1551, %v1070
        %v1553 = vadd.f32 %v1552, %v1072
        %v1554 = vadd.f32 %v1553, %v1074
        %1555 = vadd.xlane.f32.xlu0 %v1554
        %v1556 = vpop.xlane.xlu0 %1555
        %v1557 = vadd.f32 %v1076, %v1078
        %v1558 = vadd.f32 %v1557, %v1080
        %v1559 = vadd.f32 %v1558, %v1082
        %v1560 = vadd.f32 %v1559, %v1084
        %v1561 = vadd.f32 %v1560, %v1086
        %v1562 = vadd.f32 %v1561, %v1088
        %v1563 = vadd.f32 %v1562, %v1090
        %v1564 = vadd.f32 %v1563, %v1092
        %v1565 = vadd.f32 %v1564, %v1094
        %v1566 = vadd.f32 %v1565, %v1096
        %v1567 = vadd.f32 %v1566, %v1098
        %v1568 = vadd.f32 %v1567, %v1100
        %v1569 = vadd.f32 %v1568, %v1102
        %v1570 = vadd.f32 %v1569, %v1104
        %v1571 = vadd.f32 %v1570, %v1106
        %1572 = vadd.xlane.f32.xlu0 %v1571
        %v1573 = vpop.xlane.xlu0 %1572
        %v1574 = vadd.f32 %v1108, %v1110
        %v1575 = vadd.f32 %v1574, %v1112
        %v1576 = vadd.f32 %v1575, %v1114
        %v1577 = vadd.f32 %v1576, %v1116
        %v1578 = vadd.f32 %v1577, %v1118
        %v1579 = vadd.f32 %v1578, %v1120
        %v1580 = vadd.f32 %v1579, %v1122
        %v1581 = vadd.f32 %v1580, %v1124
        %v1582 = vadd.f32 %v1581, %v1126
        %v1583 = vadd.f32 %v1582, %v1128
        %v1584 = vadd.f32 %v1583, %v1130
        %v1585 = vadd.f32 %v1584, %v1132
        %v1586 = vadd.f32 %v1585, %v1134
        %v1587 = vadd.f32 %v1586, %v1136
        %v1588 = vadd.f32 %v1587, %v1138
        %1589 = vadd.xlane.f32.xlu0 %v1588
        %v1590 = vpop.xlane.xlu0 %1589
        %v1591 = vadd.f32 %v1140, %v1142
        %v1592 = vadd.f32 %v1591, %v1144
        %v1593 = vadd.f32 %v1592, %v1146
        %v1594 = vadd.f32 %v1593, %v1148
        %v1595 = vadd.f32 %v1594, %v1150
        %v1596 = vadd.f32 %v1595, %v1152
        %v1597 = vadd.f32 %v1596, %v1154
        %v1598 = vadd.f32 %v1597, %v1156
        %v1599 = vadd.f32 %v1598, %v1158
        %v1600 = vadd.f32 %v1599, %v1160
        %v1601 = vadd.f32 %v1600, %v1162
        %v1602 = vadd.f32 %v1601, %v1164
        %v1603 = vadd.f32 %v1602, %v1166
        %v1604 = vadd.f32 %v1603, %v1168
        %v1605 = vadd.f32 %v1604, %v1170
        %1606 = vadd.xlane.f32.xlu0 %v1605
        %v1607 = vpop.xlane.xlu0 %1606
        %v1608 = vadd.f32 %v1172, %v1174
        %v1609 = vadd.f32 %v1608, %v1176
        %v1610 = vadd.f32 %v1609, %v1178
        %v1611 = vadd.f32 %v1610, %v1180
        %v1612 = vadd.f32 %v1611, %v1182
        %v1613 = vadd.f32 %v1612, %v1184
        %v1614 = vadd.f32 %v1613, %v1186
        %v1615 = vadd.f32 %v1614, %v1188
        %v1616 = vadd.f32 %v1615, %v1190
        %v1617 = vadd.f32 %v1616, %v1192
        %v1618 = vadd.f32 %v1617, %v1194
        %v1619 = vadd.f32 %v1618, %v1196
        %v1620 = vadd.f32 %v1619, %v1198
        %v1621 = vadd.f32 %v1620, %v1200
        %v1622 = vadd.f32 %v1621, %v1202
        %1623 = vadd.xlane.f32.xlu0 %v1622
        %v1624 = vpop.xlane.xlu0 %1623
        %v1625 = vadd.f32 %v1204, %v1206
        %v1626 = vadd.f32 %v1625, %v1208
        %v1627 = vadd.f32 %v1626, %v1210
        %v1628 = vadd.f32 %v1627, %v1212
        %v1629 = vadd.f32 %v1628, %v1214
        %v1630 = vadd.f32 %v1629, %v1216
        %v1631 = vadd.f32 %v1630, %v1218
        %v1632 = vadd.f32 %v1631, %v1220
        %v1633 = vadd.f32 %v1632, %v1222
        %v1634 = vadd.f32 %v1633, %v1224
        %v1635 = vadd.f32 %v1634, %v1226
        %v1636 = vadd.f32 %v1635, %v1228
        %v1637 = vadd.f32 %v1636, %v1230
        %v1638 = vadd.f32 %v1637, %v1232
        %v1639 = vadd.f32 %v1638, %v1234
        %1640 = vadd.xlane.f32.xlu0 %v1639
        %v1641 = vpop.xlane.xlu0 %1640
        %v1642 = vadd.f32 %v1236, %v1238
        %v1643 = vadd.f32 %v1642, %v1240
        %v1644 = vadd.f32 %v1643, %v1242
        %v1645 = vadd.f32 %v1644, %v1244
        %v1646 = vadd.f32 %v1645, %v1246
        %v1647 = vadd.f32 %v1646, %v1248
        %v1648 = vadd.f32 %v1647, %v1250
        %v1649 = vadd.f32 %v1648, %v1252
        %v1650 = vadd.f32 %v1649, %v1254
        %v1651 = vadd.f32 %v1650, %v1256
        %v1652 = vadd.f32 %v1651, %v1258
        %v1653 = vadd.f32 %v1652, %v1260
        %v1654 = vadd.f32 %v1653, %v1262
        %v1655 = vadd.f32 %v1654, %v1264
        %v1656 = vadd.f32 %v1655, %v1266
        %1657 = vadd.xlane.f32.xlu0 %v1656
        %v1658 = vpop.xlane.xlu0 %1657
        %v1659 = vadd.f32 %v1268, %v1270
        %v1660 = vadd.f32 %v1659, %v1272
        %v1661 = vadd.f32 %v1660, %v1274
        %v1662 = vadd.f32 %v1661, %v1276
        %v1663 = vadd.f32 %v1662, %v1278
        %v1664 = vadd.f32 %v1663, %v1280
        %v1665 = vadd.f32 %v1664, %v1282
        %v1666 = vadd.f32 %v1665, %v1284
        %v1667 = vadd.f32 %v1666, %v1286
        %v1668 = vadd.f32 %v1667, %v1288
        %v1669 = vadd.f32 %v1668, %v1290
        %v1670 = vadd.f32 %v1669, %v1292
        %v1671 = vadd.f32 %v1670, %v1294
        %v1672 = vadd.f32 %v1671, %v1296
        %v1673 = vadd.f32 %v1672, %v1298
        %1674 = vadd.xlane.f32.xlu0 %v1673
        %v1675 = vpop.xlane.xlu0 %1674
        %v1676 = vadd.f32 %v1300, %v1302
        %v1677 = vadd.f32 %v1676, %v1304
        %v1678 = vadd.f32 %v1677, %v1306
        %v1679 = vadd.f32 %v1678, %v1308
        %v1680 = vadd.f32 %v1679, %v1310
        %v1681 = vadd.f32 %v1680, %v1312
        %v1682 = vadd.f32 %v1681, %v1314
        %v1683 = vadd.f32 %v1682, %v1316
        %v1684 = vadd.f32 %v1683, %v1318
        %v1685 = vadd.f32 %v1684, %v1320
        %v1686 = vadd.f32 %v1685, %v1322
        %v1687 = vadd.f32 %v1686, %v1324
        %v1688 = vadd.f32 %v1687, %v1326
        %v1689 = vadd.f32 %v1688, %v1328
        %v1690 = vadd.f32 %v1689, %v1330
        %1691 = vadd.xlane.f32.xlu0 %v1690
        %v1692 = vpop.xlane.xlu0 %1691
        %v1693 = vadd.f32 %v1332, %v1334
        %v1694 = vadd.f32 %v1693, %v1336
        %v1695 = vadd.f32 %v1694, %v1338
        %v1696 = vadd.f32 %v1695, %v1340
        %v1697 = vadd.f32 %v1696, %v1342
        %v1698 = vadd.f32 %v1697, %v1344
        %v1699 = vadd.f32 %v1698, %v1346
        %v1700 = vadd.f32 %v1699, %v1348
        %v1701 = vadd.f32 %v1700, %v1350
        %v1702 = vadd.f32 %v1701, %v1352
        %v1703 = vadd.f32 %v1702, %v1354
        %v1704 = vadd.f32 %v1703, %v1356
        %v1705 = vadd.f32 %v1704, %v1358
        %v1706 = vadd.f32 %v1705, %v1360
        %v1707 = vadd.f32 %v1706, %v1362
        %1708 = vadd.xlane.f32.xlu0 %v1707
        %v1709 = vpop.xlane.xlu0 %1708
        %v1710 = vadd.f32 %v1364, %v1366
        %v1711 = vadd.f32 %v1710, %v1368
        %v1712 = vadd.f32 %v1711, %v1370
        %v1713 = vadd.f32 %v1712, %v1372
        %v1714 = vadd.f32 %v1713, %v1374
        %v1715 = vadd.f32 %v1714, %v1376
        %v1716 = vadd.f32 %v1715, %v1378
        %v1717 = vadd.f32 %v1716, %v1380
        %v1718 = vadd.f32 %v1717, %v1382
        %v1719 = vadd.f32 %v1718, %v1384
        %v1720 = vadd.f32 %v1719, %v1386
        %v1721 = vadd.f32 %v1720, %v1388
        %v1722 = vadd.f32 %v1721, %v1390
        %v1723 = vadd.f32 %v1722, %v1392
        %v1724 = vadd.f32 %v1723, %v1394
        %1725 = vadd.xlane.f32.xlu0 %v1724
        %v1726 = vpop.xlane.xlu0 %1725
        %v1727 = vadd.f32 %v1396, %v1398
        %v1728 = vadd.f32 %v1727, %v1400
        %v1729 = vadd.f32 %v1728, %v1402
        %v1730 = vadd.f32 %v1729, %v1404
        %v1731 = vadd.f32 %v1730, %v1406
        %v1732 = vadd.f32 %v1731, %v1408
        %v1733 = vadd.f32 %v1732, %v1410
        %v1734 = vadd.f32 %v1733, %v1412
        %v1735 = vadd.f32 %v1734, %v1414
        %v1736 = vadd.f32 %v1735, %v1416
        %v1737 = vadd.f32 %v1736, %v1418
        %v1738 = vadd.f32 %v1737, %v1420
        %v1739 = vadd.f32 %v1738, %v1422
        %v1740 = vadd.f32 %v1739, %v1424
        %v1741 = vadd.f32 %v1740, %v1426
        %1742 = vadd.xlane.f32.xlu0 %v1741
        %v1743 = vpop.xlane.xlu0 %1742
        %v1744 = vadd.f32 %v1428, %v1430
        %v1745 = vadd.f32 %v1744, %v1432
        %v1746 = vadd.f32 %v1745, %v1434
        %v1747 = vadd.f32 %v1746, %v1436
        %v1748 = vadd.f32 %v1747, %v1438
        %v1749 = vadd.f32 %v1748, %v1440
        %v1750 = vadd.f32 %v1749, %v1442
        %v1751 = vadd.f32 %v1750, %v1444
        %v1752 = vadd.f32 %v1751, %v1446
        %v1753 = vadd.f32 %v1752, %v1448
        %v1754 = vadd.f32 %v1753, %v1450
        %v1755 = vadd.f32 %v1754, %v1452
        %v1756 = vadd.f32 %v1755, %v1454
        %v1757 = vadd.f32 %v1756, %v1456
        %v1758 = vadd.f32 %v1757, %v1458
        %1759 = vadd.xlane.f32.xlu0 %v1758
        %v1760 = vpop.xlane.xlu0 %1759
        %v1761 = vadd.f32 %v1460, %v1462
        %v1762 = vadd.f32 %v1761, %v1464
        %v1763 = vadd.f32 %v1762, %v1466
        %v1764 = vadd.f32 %v1763, %v1468
        %v1765 = vadd.f32 %v1764, %v1470
        %v1766 = vadd.f32 %v1765, %v1472
        %v1767 = vadd.f32 %v1766, %v1474
        %v1768 = vadd.f32 %v1767, %v1476
        %v1769 = vadd.f32 %v1768, %v1478
        %v1770 = vadd.f32 %v1769, %v1480
        %v1771 = vadd.f32 %v1770, %v1482
        %v1772 = vadd.f32 %v1771, %v1484
        %v1773 = vadd.f32 %v1772, %v1486
        %v1774 = vadd.f32 %v1773, %v1488
        %v1775 = vadd.f32 %v1774, %v1490
        %1776 = vadd.xlane.f32.xlu0 %v1775
        %v1777 = vpop.xlane.xlu0 %1776
        %v1778 = vadd.f32 %v1492, %v1494
        %v1779 = vadd.f32 %v1778, %v1496
        %v1780 = vadd.f32 %v1779, %v1498
        %v1781 = vadd.f32 %v1780, %v1500
        %v1782 = vadd.f32 %v1781, %v1502
        %v1783 = vadd.f32 %v1782, %v1504
        %v1784 = vadd.f32 %v1783, %v1506
        %v1785 = vadd.f32 %v1784, %v1508
        %v1786 = vadd.f32 %v1785, %v1510
        %v1787 = vadd.f32 %v1786, %v1512
        %v1788 = vadd.f32 %v1787, %v1514
        %v1789 = vadd.f32 %v1788, %v1516
        %v1790 = vadd.f32 %v1789, %v1518
        %v1791 = vadd.f32 %v1790, %v1520
        %v1792 = vadd.f32 %v1791, %v1522
        %1793 = vadd.xlane.f32.xlu0 %v1792
        %v1794 = vpop.xlane.xlu0 %1793
        %v1795 = vadd.f32 %v739, %v1539
        %v1796 = vadd.f32 %v740, %v1556
        %v1797 = vadd.f32 %v741, %v1573
        %v1798 = vadd.f32 %v742, %v1590
        %v1799 = vadd.f32 %v743, %v1607
        %v1800 = vadd.f32 %v744, %v1624
        %v1801 = vadd.f32 %v745, %v1641
        %v1802 = vadd.f32 %v746, %v1658
        %v1803 = vadd.f32 %v747, %v1675
        %v1804 = vadd.f32 %v748, %v1692
        %v1805 = vadd.f32 %v749, %v1709
        %v1806 = vadd.f32 %v750, %v1726
        %v1807 = vadd.f32 %v751, %v1743
        %v1808 = vadd.f32 %v752, %v1760
        %v1809 = vadd.f32 %v753, %v1777
        %v1810 = vadd.f32 %v754, %v1794
        %vm1811 = vcmask 7168
        %1812 = vst.msk [vmem:[#allocation2] sm:$0xff] %vm1811, %v1795
        %1813 = vst.msk [vmem:[#allocation2 + $0x8] sm:$0xff] %vm1811, %v1796
        %1814 = vst.msk [vmem:[#allocation2 + $0x10] sm:$0xff] %vm1811, %v1797
        %1815 = vst.msk [vmem:[#allocation2 + $0x18] sm:$0xff] %vm1811, %v1798
        %1816 = vst.msk [vmem:[#allocation2 + $0x20] sm:$0xff] %vm1811, %v1799
        %1817 = vst.msk [vmem:[#allocation2 + $0x28] sm:$0xff] %vm1811, %v1800
        %1818 = vst.msk [vmem:[#allocation2 + $0x30] sm:$0xff] %vm1811, %v1801
        %1819 = vst.msk [vmem:[#allocation2 + $0x38] sm:$0xff] %vm1811, %v1802
        %1820 = vst.msk [vmem:[#allocation2 + $0x40] sm:$0xff] %vm1811, %v1803
        %1821 = vst.msk [vmem:[#allocation2 + $0x48] sm:$0xff] %vm1811, %v1804
        %1822 = vst.msk [vmem:[#allocation2 + $0x50] sm:$0xff] %vm1811, %v1805
        %1823 = vst.msk [vmem:[#allocation2 + $0x58] sm:$0xff] %vm1811, %v1806
        %1824 = vst.msk [vmem:[#allocation2 + $0x60] sm:$0xff] %vm1811, %v1807
        %1825 = vst.msk [vmem:[#allocation2 + $0x68] sm:$0xff] %vm1811, %v1808
        %1826 = vst.msk [vmem:[#allocation2 + $0x70] sm:$0xff] %vm1811, %v1809
        %1827 = vst.msk [vmem:[#allocation2 + $0x78] sm:$0xff] %vm1811, %v1810
        %p1828 = scmp.eq.s32.totalorder %s21, 1
        // Predicated region
        $region37: #{tpu_custom_call.1} parent=27 // pred_check
          %p1829 = pneg %p1828
        $region38: #{tpu_custom_call.1} parent=27 // pred_check_branch
          %1831 = sbr.rel (%p1829) target = $region40
        $region39: #{tpu_custom_call.1} parent=27 // pred_region
          %v1832 = vld [vmem:[%s198] sm:$0xff]
          %v1833 = vld [vmem:[%s198 + $0x8] sm:$0xff]
          %v1834 = vld [vmem:[%s198 + $0x10] sm:$0xff]
          %v1835 = vld [vmem:[%s198 + $0x18] sm:$0xff]
          %v1836 = vld [vmem:[%s198 + $0x20] sm:$0xff]
          %v1837 = vld [vmem:[%s198 + $0x28] sm:$0xff]
          %v1838 = vld [vmem:[%s198 + $0x30] sm:$0xff]
          %v1839 = vld [vmem:[%s198 + $0x38] sm:$0xff]
          %v1840 = vld [vmem:[%s198 + $0x40] sm:$0xff]
          %v1841 = vld [vmem:[%s198 + $0x48] sm:$0xff]
          %v1842 = vld [vmem:[%s198 + $0x50] sm:$0xff]
          %v1843 = vld [vmem:[%s198 + $0x58] sm:$0xff]
          %v1844 = vld [vmem:[%s198 + $0x60] sm:$0xff]
          %v1845 = vld [vmem:[%s198 + $0x68] sm:$0xff]
          %v1846 = vld [vmem:[%s198 + $0x70] sm:$0xff]
          %v1847 = vld [vmem:[%s198 + $0x78] sm:$0xff]
          %v1848 = vmul.f32 %v1832, %v1832
          %v1849 = vmul.f32 %v1833, %v1833
          %v1850 = vmul.f32 %v1834, %v1834
          %v1851 = vmul.f32 %v1835, %v1835
          %v1852 = vmul.f32 %v1836, %v1836
          %v1853 = vmul.f32 %v1837, %v1837
          %v1854 = vmul.f32 %v1838, %v1838
          %v1855 = vmul.f32 %v1839, %v1839
          %v1856 = vmul.f32 %v1840, %v1840
          %v1857 = vmul.f32 %v1841, %v1841
          %v1858 = vmul.f32 %v1842, %v1842
          %v1859 = vmul.f32 %v1843, %v1843
          %v1860 = vmul.f32 %v1844, %v1844
          %v1861 = vmul.f32 %v1845, %v1845
          %v1862 = vmul.f32 %v1846, %v1846
          %v1863 = vmul.f32 %v1847, %v1847
          %v1864 = vsub.f32 1.0, %v1848
          %v1865 = vsub.f32 1.0, %v1849
          %v1866 = vsub.f32 1.0, %v1850
          %v1867 = vsub.f32 1.0, %v1851
          %v1868 = vsub.f32 1.0, %v1852
          %v1869 = vsub.f32 1.0, %v1853
          %v1870 = vsub.f32 1.0, %v1854
          %v1871 = vsub.f32 1.0, %v1855
          %v1872 = vsub.f32 1.0, %v1856
          %v1873 = vsub.f32 1.0, %v1857
          %v1874 = vsub.f32 1.0, %v1858
          %v1875 = vsub.f32 1.0, %v1859
          %v1876 = vsub.f32 1.0, %v1860
          %v1877 = vsub.f32 1.0, %v1861
          %v1878 = vsub.f32 1.0, %v1862
          %v1879 = vsub.f32 1.0, %v1863
          %v1880 = vmax.f32 %v1864, 0.0
          %v1881 = vmax.f32 %v1865, 0.0
          %v1882 = vmax.f32 %v1866, 0.0
          %v1883 = vmax.f32 %v1867, 0.0
          %v1884 = vmax.f32 %v1868, 0.0
          %v1885 = vmax.f32 %v1869, 0.0
          %v1886 = vmax.f32 %v1870, 0.0
          %v1887 = vmax.f32 %v1871, 0.0
          %v1888 = vmax.f32 %v1872, 0.0
          %v1889 = vmax.f32 %v1873, 0.0
          %v1890 = vmax.f32 %v1874, 0.0
          %v1891 = vmax.f32 %v1875, 0.0
          %v1892 = vmax.f32 %v1876, 0.0
          %v1893 = vmax.f32 %v1877, 0.0
          %v1894 = vmax.f32 %v1878, 0.0
          %v1895 = vmax.f32 %v1879, 0.0
          %v1896 = vrsqrt.pop %v1880
          %v1897 = vmul.f32 %v1880, %v1896
          %vm1898 = vcmp.eq.f32.partialorder %v1880, inf
          %v1899 = vsel %vm1898, %v1880, %v1897
          %vm1900 = vcmp.eq.f32.partialorder %v1880, 0.0
          %v1901 = vand.u32 %v1880, 2147483648
          %v1902 = vsel %vm1900, %v1901, %v1899
          %v1903 = vrsqrt.pop %v1881
          %v1904 = vmul.f32 %v1881, %v1903
          %vm1905 = vcmp.eq.f32.partialorder %v1881, inf
          %v1906 = vsel %vm1905, %v1881, %v1904
          %vm1907 = vcmp.eq.f32.partialorder %v1881, 0.0
          %v1908 = vand.u32 %v1881, 2147483648
          %v1909 = vsel %vm1907, %v1908, %v1906
          %v1910 = vrsqrt.pop %v1882
          %v1911 = vmul.f32 %v1882, %v1910
          %vm1912 = vcmp.eq.f32.partialorder %v1882, inf
          %v1913 = vsel %vm1912, %v1882, %v1911
          %vm1914 = vcmp.eq.f32.partialorder %v1882, 0.0
          %v1915 = vand.u32 %v1882, 2147483648
          %v1916 = vsel %vm1914, %v1915, %v1913
          %v1917 = vrsqrt.pop %v1883
          %v1918 = vmul.f32 %v1883, %v1917
          %vm1919 = vcmp.eq.f32.partialorder %v1883, inf
          %v1920 = vsel %vm1919, %v1883, %v1918
          %vm1921 = vcmp.eq.f32.partialorder %v1883, 0.0
          %v1922 = vand.u32 %v1883, 2147483648
          %v1923 = vsel %vm1921, %v1922, %v1920
          %v1924 = vrsqrt.pop %v1884
          %v1925 = vmul.f32 %v1884, %v1924
          %vm1926 = vcmp.eq.f32.partialorder %v1884, inf
          %v1927 = vsel %vm1926, %v1884, %v1925
          %vm1928 = vcmp.eq.f32.partialorder %v1884, 0.0
          %v1929 = vand.u32 %v1884, 2147483648
          %v1930 = vsel %vm1928, %v1929, %v1927
          %v1931 = vrsqrt.pop %v1885
          %v1932 = vmul.f32 %v1885, %v1931
          %vm1933 = vcmp.eq.f32.partialorder %v1885, inf
          %v1934 = vsel %vm1933, %v1885, %v1932
          %vm1935 = vcmp.eq.f32.partialorder %v1885, 0.0
          %v1936 = vand.u32 %v1885, 2147483648
          %v1937 = vsel %vm1935, %v1936, %v1934
          %v1938 = vrsqrt.pop %v1886
          %v1939 = vmul.f32 %v1886, %v1938
          %vm1940 = vcmp.eq.f32.partialorder %v1886, inf
          %v1941 = vsel %vm1940, %v1886, %v1939
          %vm1942 = vcmp.eq.f32.partialorder %v1886, 0.0
          %v1943 = vand.u32 %v1886, 2147483648
          %v1944 = vsel %vm1942, %v1943, %v1941
          %v1945 = vrsqrt.pop %v1887
          %v1946 = vmul.f32 %v1887, %v1945
          %vm1947 = vcmp.eq.f32.partialorder %v1887, inf
          %v1948 = vsel %vm1947, %v1887, %v1946
          %vm1949 = vcmp.eq.f32.partialorder %v1887, 0.0
          %v1950 = vand.u32 %v1887, 2147483648
          %v1951 = vsel %vm1949, %v1950, %v1948
          %v1952 = vrsqrt.pop %v1888
          %v1953 = vmul.f32 %v1888, %v1952
          %vm1954 = vcmp.eq.f32.partialorder %v1888, inf
          %v1955 = vsel %vm1954, %v1888, %v1953
          %vm1956 = vcmp.eq.f32.partialorder %v1888, 0.0
          %v1957 = vand.u32 %v1888, 2147483648
          %v1958 = vsel %vm1956, %v1957, %v1955
          %v1959 = vrsqrt.pop %v1889
          %v1960 = vmul.f32 %v1889, %v1959
          %vm1961 = vcmp.eq.f32.partialorder %v1889, inf
          %v1962 = vsel %vm1961, %v1889, %v1960
          %vm1963 = vcmp.eq.f32.partialorder %v1889, 0.0
          %v1964 = vand.u32 %v1889, 2147483648
          %v1965 = vsel %vm1963, %v1964, %v1962
          %v1966 = vrsqrt.pop %v1890
          %v1967 = vmul.f32 %v1890, %v1966
          %vm1968 = vcmp.eq.f32.partialorder %v1890, inf
          %v1969 = vsel %vm1968, %v1890, %v1967
          %vm1970 = vcmp.eq.f32.partialorder %v1890, 0.0
          %v1971 = vand.u32 %v1890, 2147483648
          %v1972 = vsel %vm1970, %v1971, %v1969
          %v1973 = vrsqrt.pop %v1891
          %v1974 = vmul.f32 %v1891, %v1973
          %vm1975 = vcmp.eq.f32.partialorder %v1891, inf
          %v1976 = vsel %vm1975, %v1891, %v1974
          %vm1977 = vcmp.eq.f32.partialorder %v1891, 0.0
          %v1978 = vand.u32 %v1891, 2147483648
          %v1979 = vsel %vm1977, %v1978, %v1976
          %v1980 = vrsqrt.pop %v1892
          %v1981 = vmul.f32 %v1892, %v1980
          %vm1982 = vcmp.eq.f32.partialorder %v1892, inf
          %v1983 = vsel %vm1982, %v1892, %v1981
          %vm1984 = vcmp.eq.f32.partialorder %v1892, 0.0
          %v1985 = vand.u32 %v1892, 2147483648
          %v1986 = vsel %vm1984, %v1985, %v1983
          %v1987 = vrsqrt.pop %v1893
          %v1988 = vmul.f32 %v1893, %v1987
          %vm1989 = vcmp.eq.f32.partialorder %v1893, inf
          %v1990 = vsel %vm1989, %v1893, %v1988
          %vm1991 = vcmp.eq.f32.partialorder %v1893, 0.0
          %v1992 = vand.u32 %v1893, 2147483648
          %v1993 = vsel %vm1991, %v1992, %v1990
          %v1994 = vrsqrt.pop %v1894
          %v1995 = vmul.f32 %v1894, %v1994
          %vm1996 = vcmp.eq.f32.partialorder %v1894, inf
          %v1997 = vsel %vm1996, %v1894, %v1995
          %vm1998 = vcmp.eq.f32.partialorder %v1894, 0.0
          %v1999 = vand.u32 %v1894, 2147483648
          %v2000 = vsel %vm1998, %v1999, %v1997
          %v2001 = vrsqrt.pop %v1895
          %v2002 = vmul.f32 %v1895, %v2001
          %vm2003 = vcmp.eq.f32.partialorder %v1895, inf
          %v2004 = vsel %vm2003, %v1895, %v2002
          %vm2005 = vcmp.eq.f32.partialorder %v1895, 0.0
          %v2006 = vand.u32 %v1895, 2147483648
          %v2007 = vsel %vm2005, %v2006, %v2004
          %v2008 = vmul.f32 %v1832, 0.87758255
          %v2009 = vmul.f32 %v1833, 0.87758255
          %v2010 = vmul.f32 %v1834, 0.87758255
          %v2011 = vmul.f32 %v1835, 0.87758255
          %v2012 = vmul.f32 %v1836, 0.87758255
          %v2013 = vmul.f32 %v1837, 0.87758255
          %v2014 = vmul.f32 %v1838, 0.87758255
          %v2015 = vmul.f32 %v1839, 0.87758255
          %v2016 = vmul.f32 %v1840, 0.87758255
          %v2017 = vmul.f32 %v1841, 0.87758255
          %v2018 = vmul.f32 %v1842, 0.87758255
          %v2019 = vmul.f32 %v1843, 0.87758255
          %v2020 = vmul.f32 %v1844, 0.87758255
          %v2021 = vmul.f32 %v1845, 0.87758255
          %v2022 = vmul.f32 %v1846, 0.87758255
          %v2023 = vmul.f32 %v1847, 0.87758255
          %v2024 = vmul.f32 %v1902, 0.47942555
          %v2025 = vmul.f32 %v1909, 0.47942555
          %v2026 = vmul.f32 %v1916, 0.47942555
          %v2027 = vmul.f32 %v1923, 0.47942555
          %v2028 = vmul.f32 %v1930, 0.47942555
          %v2029 = vmul.f32 %v1937, 0.47942555
          %v2030 = vmul.f32 %v1944, 0.47942555
          %v2031 = vmul.f32 %v1951, 0.47942555
          %v2032 = vmul.f32 %v1958, 0.47942555
          %v2033 = vmul.f32 %v1965, 0.47942555
          %v2034 = vmul.f32 %v1972, 0.47942555
          %v2035 = vmul.f32 %v1979, 0.47942555
          %v2036 = vmul.f32 %v1986, 0.47942555
          %v2037 = vmul.f32 %v1993, 0.47942555
          %v2038 = vmul.f32 %v2000, 0.47942555
          %v2039 = vmul.f32 %v2007, 0.47942555
          %v2040 = vsub.f32 %v2008, %v2024
          %v2041 = vsub.f32 %v2009, %v2025
          %v2042 = vsub.f32 %v2010, %v2026
          %v2043 = vsub.f32 %v2011, %v2027
          %v2044 = vsub.f32 %v2012, %v2028
          %v2045 = vsub.f32 %v2013, %v2029
          %v2046 = vsub.f32 %v2014, %v2030
          %v2047 = vsub.f32 %v2015, %v2031
          %v2048 = vsub.f32 %v2016, %v2032
          %v2049 = vsub.f32 %v2017, %v2033
          %v2050 = vsub.f32 %v2018, %v2034
          %v2051 = vsub.f32 %v2019, %v2035
          %v2052 = vsub.f32 %v2020, %v2036
          %v2053 = vsub.f32 %v2021, %v2037
          %v2054 = vsub.f32 %v2022, %v2038
          %v2055 = vsub.f32 %v2023, %v2039
          %vm2056 = vcmp.lt.f32.partialorder %v1832, -0.87758255
          %vm2057 = vcmp.lt.f32.partialorder %v1833, -0.87758255
          %vm2058 = vcmp.lt.f32.partialorder %v1834, -0.87758255
          %vm2059 = vcmp.lt.f32.partialorder %v1835, -0.87758255
          %vm2060 = vcmp.lt.f32.partialorder %v1836, -0.87758255
          %vm2061 = vcmp.lt.f32.partialorder %v1837, -0.87758255
          %vm2062 = vcmp.lt.f32.partialorder %v1838, -0.87758255
          %vm2063 = vcmp.lt.f32.partialorder %v1839, -0.87758255
          %vm2064 = vcmp.lt.f32.partialorder %v1840, -0.87758255
          %vm2065 = vcmp.lt.f32.partialorder %v1841, -0.87758255
          %vm2066 = vcmp.lt.f32.partialorder %v1842, -0.87758255
          %vm2067 = vcmp.lt.f32.partialorder %v1843, -0.87758255
          %vm2068 = vcmp.lt.f32.partialorder %v1844, -0.87758255
          %vm2069 = vcmp.lt.f32.partialorder %v1845, -0.87758255
          %vm2070 = vcmp.lt.f32.partialorder %v1846, -0.87758255
          %vm2071 = vcmp.lt.f32.partialorder %v1847, -0.87758255
          %v2072 = vsel %vm2056, %v1832, %v2040
          %v2073 = vsel %vm2057, %v1833, %v2041
          %v2074 = vsel %vm2058, %v1834, %v2042
          %v2075 = vsel %vm2059, %v1835, %v2043
          %v2076 = vsel %vm2060, %v1836, %v2044
          %v2077 = vsel %vm2061, %v1837, %v2045
          %v2078 = vsel %vm2062, %v1838, %v2046
          %v2079 = vsel %vm2063, %v1839, %v2047
          %v2080 = vsel %vm2064, %v1840, %v2048
          %v2081 = vsel %vm2065, %v1841, %v2049
          %v2082 = vsel %vm2066, %v1842, %v2050
          %v2083 = vsel %vm2067, %v1843, %v2051
          %v2084 = vsel %vm2068, %v1844, %v2052
          %v2085 = vsel %vm2069, %v1845, %v2053
          %v2086 = vsel %vm2070, %v1846, %v2054
          %v2087 = vsel %vm2071, %v1847, %v2055
          %v2088 = vmul.f32 %v2072, 30.0
          %v2089 = vmul.f32 %v2073, 30.0
          %v2090 = vmul.f32 %v2074, 30.0
          %v2091 = vmul.f32 %v2075, 30.0
          %v2092 = vmul.f32 %v2076, 30.0
          %v2093 = vmul.f32 %v2077, 30.0
          %v2094 = vmul.f32 %v2078, 30.0
          %v2095 = vmul.f32 %v2079, 30.0
          %v2096 = vmul.f32 %v2080, 30.0
          %v2097 = vmul.f32 %v2081, 30.0
          %v2098 = vmul.f32 %v2082, 30.0
          %v2099 = vmul.f32 %v2083, 30.0
          %v2100 = vmul.f32 %v2084, 30.0
          %v2101 = vmul.f32 %v2085, 30.0
          %v2102 = vmul.f32 %v2086, 30.0
          %v2103 = vmul.f32 %v2087, 30.0
          %v2104 = vmul.f32 %v1832, 30.0
          %v2105 = vmul.f32 %v1833, 30.0
          %v2106 = vmul.f32 %v1834, 30.0
          %v2107 = vmul.f32 %v1835, 30.0
          %v2108 = vmul.f32 %v1836, 30.0
          %v2109 = vmul.f32 %v1837, 30.0
          %v2110 = vmul.f32 %v1838, 30.0
          %v2111 = vmul.f32 %v1839, 30.0
          %v2112 = vmul.f32 %v1840, 30.0
          %v2113 = vmul.f32 %v1841, 30.0
          %v2114 = vmul.f32 %v1842, 30.0
          %v2115 = vmul.f32 %v1843, 30.0
          %v2116 = vmul.f32 %v1844, 30.0
          %v2117 = vmul.f32 %v1845, 30.0
          %v2118 = vmul.f32 %v1846, 30.0
          %v2119 = vmul.f32 %v1847, 30.0
          %v2120 = vld [vmem:[#allocation2] sm:$0xff]
          %v2121 = vld [vmem:[#allocation2 + $0x8] sm:$0xff]
          %v2122 = vld [vmem:[#allocation2 + $0x10] sm:$0xff]
          %v2123 = vld [vmem:[#allocation2 + $0x18] sm:$0xff]
          %v2124 = vld [vmem:[#allocation2 + $0x20] sm:$0xff]
          %v2125 = vld [vmem:[#allocation2 + $0x28] sm:$0xff]
          %v2126 = vld [vmem:[#allocation2 + $0x30] sm:$0xff]
          %v2127 = vld [vmem:[#allocation2 + $0x38] sm:$0xff]
          %v2128 = vld [vmem:[#allocation2 + $0x40] sm:$0xff]
          %v2129 = vld [vmem:[#allocation2 + $0x48] sm:$0xff]
          %v2130 = vld [vmem:[#allocation2 + $0x50] sm:$0xff]
          %v2131 = vld [vmem:[#allocation2 + $0x58] sm:$0xff]
          %v2132 = vld [vmem:[#allocation2 + $0x60] sm:$0xff]
          %v2133 = vld [vmem:[#allocation2 + $0x68] sm:$0xff]
          %v2134 = vld [vmem:[#allocation2 + $0x70] sm:$0xff]
          %v2135 = vld [vmem:[#allocation2 + $0x78] sm:$0xff]
          %v2136 = vsub.f32 %v2104, 30.0
          %v2137 = vsub.f32 %v2105, 30.0
          %v2138 = vsub.f32 %v2106, 30.0
          %v2139 = vsub.f32 %v2107, 30.0
          %v2140 = vsub.f32 %v2108, 30.0
          %v2141 = vsub.f32 %v2109, 30.0
          %v2142 = vsub.f32 %v2110, 30.0
          %v2143 = vsub.f32 %v2111, 30.0
          %v2144 = vsub.f32 %v2112, 30.0
          %v2145 = vsub.f32 %v2113, 30.0
          %v2146 = vsub.f32 %v2114, 30.0
          %v2147 = vsub.f32 %v2115, 30.0
          %v2148 = vsub.f32 %v2116, 30.0
          %v2149 = vsub.f32 %v2117, 30.0
          %v2150 = vsub.f32 %v2118, 30.0
          %v2151 = vsub.f32 %v2119, 30.0
          %v2152 = vmul.f32 %v2136, 1.442695
          %v2153 = vpow.pop %v2152
          %v2154 = vmul.f32 %v2137, 1.442695
          %v2155 = vpow.pop %v2154
          %v2156 = vmul.f32 %v2138, 1.442695
          %v2157 = vpow.pop %v2156
          %v2158 = vmul.f32 %v2139, 1.442695
          %v2159 = vpow.pop %v2158
          %v2160 = vmul.f32 %v2140, 1.442695
          %v2161 = vpow.pop %v2160
          %v2162 = vmul.f32 %v2141, 1.442695
          %v2163 = vpow.pop %v2162
          %v2164 = vmul.f32 %v2142, 1.442695
          %v2165 = vpow.pop %v2164
          %v2166 = vmul.f32 %v2143, 1.442695
          %v2167 = vpow.pop %v2166
          %v2168 = vmul.f32 %v2144, 1.442695
          %v2169 = vpow.pop %v2168
          %v2170 = vmul.f32 %v2145, 1.442695
          %v2171 = vpow.pop %v2170
          %v2172 = vmul.f32 %v2146, 1.442695
          %v2173 = vpow.pop %v2172
          %v2174 = vmul.f32 %v2147, 1.442695
          %v2175 = vpow.pop %v2174
          %v2176 = vmul.f32 %v2148, 1.442695
          %v2177 = vpow.pop %v2176
          %v2178 = vmul.f32 %v2149, 1.442695
          %v2179 = vpow.pop %v2178
          %v2180 = vmul.f32 %v2150, 1.442695
          %v2181 = vpow.pop %v2180
          %v2182 = vmul.f32 %v2151, 1.442695
          %v2183 = vpow.pop %v2182
          %v2184 = vsub.f32 %v2120, %v2153
          %v2185 = vsub.f32 %v2121, %v2155
          %v2186 = vsub.f32 %v2122, %v2157
          %v2187 = vsub.f32 %v2123, %v2159
          %v2188 = vsub.f32 %v2124, %v2161
          %v2189 = vsub.f32 %v2125, %v2163
          %v2190 = vsub.f32 %v2126, %v2165
          %v2191 = vsub.f32 %v2127, %v2167
          %v2192 = vsub.f32 %v2128, %v2169
          %v2193 = vsub.f32 %v2129, %v2171
          %v2194 = vsub.f32 %v2130, %v2173
          %v2195 = vsub.f32 %v2131, %v2175
          %v2196 = vsub.f32 %v2132, %v2177
          %v2197 = vsub.f32 %v2133, %v2179
          %v2198 = vsub.f32 %v2134, %v2181
          %v2199 = vsub.f32 %v2135, %v2183
          %v2200 = vsub.f32 %v2088, 30.0
          %v2201 = vsub.f32 %v2089, 30.0
          %v2202 = vsub.f32 %v2090, 30.0
          %v2203 = vsub.f32 %v2091, 30.0
          %v2204 = vsub.f32 %v2092, 30.0
          %v2205 = vsub.f32 %v2093, 30.0
          %v2206 = vsub.f32 %v2094, 30.0
          %v2207 = vsub.f32 %v2095, 30.0
          %v2208 = vsub.f32 %v2096, 30.0
          %v2209 = vsub.f32 %v2097, 30.0
          %v2210 = vsub.f32 %v2098, 30.0
          %v2211 = vsub.f32 %v2099, 30.0
          %v2212 = vsub.f32 %v2100, 30.0
          %v2213 = vsub.f32 %v2101, 30.0
          %v2214 = vsub.f32 %v2102, 30.0
          %v2215 = vsub.f32 %v2103, 30.0
          %v2216 = vmul.f32 %v2200, 1.442695
          %v2217 = vpow.pop %v2216
          %v2218 = vmul.f32 %v2201, 1.442695
          %v2219 = vpow.pop %v2218
          %v2220 = vmul.f32 %v2202, 1.442695
          %v2221 = vpow.pop %v2220
          %v2222 = vmul.f32 %v2203, 1.442695
          %v2223 = vpow.pop %v2222
          %v2224 = vmul.f32 %v2204, 1.442695
          %v2225 = vpow.pop %v2224
          %v2226 = vmul.f32 %v2205, 1.442695
          %v2227 = vpow.pop %v2226
          %v2228 = vmul.f32 %v2206, 1.442695
          %v2229 = vpow.pop %v2228
          %v2230 = vmul.f32 %v2207, 1.442695
          %v2231 = vpow.pop %v2230
          %v2232 = vmul.f32 %v2208, 1.442695
          %v2233 = vpow.pop %v2232
          %v2234 = vmul.f32 %v2209, 1.442695
          %v2235 = vpow.pop %v2234
          %v2236 = vmul.f32 %v2210, 1.442695
          %v2237 = vpow.pop %v2236
          %v2238 = vmul.f32 %v2211, 1.442695
          %v2239 = vpow.pop %v2238
          %v2240 = vmul.f32 %v2212, 1.442695
          %v2241 = vpow.pop %v2240
          %v2242 = vmul.f32 %v2213, 1.442695
          %v2243 = vpow.pop %v2242
          %v2244 = vmul.f32 %v2214, 1.442695
          %v2245 = vpow.pop %v2244
          %v2246 = vmul.f32 %v2215, 1.442695
          %v2247 = vpow.pop %v2246
          %v2248 = vadd.f32 %v2184, %v2217
          %v2249 = vadd.f32 %v2185, %v2219
          %v2250 = vadd.f32 %v2186, %v2221
          %v2251 = vadd.f32 %v2187, %v2223
          %v2252 = vadd.f32 %v2188, %v2225
          %v2253 = vadd.f32 %v2189, %v2227
          %v2254 = vadd.f32 %v2190, %v2229
          %v2255 = vadd.f32 %v2191, %v2231
          %v2256 = vadd.f32 %v2192, %v2233
          %v2257 = vadd.f32 %v2193, %v2235
          %v2258 = vadd.f32 %v2194, %v2237
          %v2259 = vadd.f32 %v2195, %v2239
          %v2260 = vadd.f32 %v2196, %v2241
          %v2261 = vadd.f32 %v2197, %v2243
          %v2262 = vadd.f32 %v2198, %v2245
          %v2263 = vadd.f32 %v2199, %v2247
          %v2264 = vlog2.pop %v2248
          %v2265 = vmul.f32 %v2264, 0.6931472
          %v2266 = vlog2.pop %v2249
          %v2267 = vmul.f32 %v2266, 0.6931472
          %v2268 = vlog2.pop %v2250
          %v2269 = vmul.f32 %v2268, 0.6931472
          %v2270 = vlog2.pop %v2251
          %v2271 = vmul.f32 %v2270, 0.6931472
          %v2272 = vlog2.pop %v2252
          %v2273 = vmul.f32 %v2272, 0.6931472
          %v2274 = vlog2.pop %v2253
          %v2275 = vmul.f32 %v2274, 0.6931472
          %v2276 = vlog2.pop %v2254
          %v2277 = vmul.f32 %v2276, 0.6931472
          %v2278 = vlog2.pop %v2255
          %v2279 = vmul.f32 %v2278, 0.6931472
          %v2280 = vlog2.pop %v2256
          %v2281 = vmul.f32 %v2280, 0.6931472
          %v2282 = vlog2.pop %v2257
          %v2283 = vmul.f32 %v2282, 0.6931472
          %v2284 = vlog2.pop %v2258
          %v2285 = vmul.f32 %v2284, 0.6931472
          %v2286 = vlog2.pop %v2259
          %v2287 = vmul.f32 %v2286, 0.6931472
          %v2288 = vlog2.pop %v2260
          %v2289 = vmul.f32 %v2288, 0.6931472
          %v2290 = vlog2.pop %v2261
          %v2291 = vmul.f32 %v2290, 0.6931472
          %v2292 = vlog2.pop %v2262
          %v2293 = vmul.f32 %v2292, 0.6931472
          %v2294 = vlog2.pop %v2263
          %v2295 = vmul.f32 %v2294, 0.6931472
          %v2296 = vadd.f32 %v2265, 30.0
          %v2297 = vadd.f32 %v2267, 30.0
          %v2298 = vadd.f32 %v2269, 30.0
          %v2299 = vadd.f32 %v2271, 30.0
          %v2300 = vadd.f32 %v2273, 30.0
          %v2301 = vadd.f32 %v2275, 30.0
          %v2302 = vadd.f32 %v2277, 30.0
          %v2303 = vadd.f32 %v2279, 30.0
          %v2304 = vadd.f32 %v2281, 30.0
          %v2305 = vadd.f32 %v2283, 30.0
          %v2306 = vadd.f32 %v2285, 30.0
          %v2307 = vadd.f32 %v2287, 30.0
          %v2308 = vadd.f32 %v2289, 30.0
          %v2309 = vadd.f32 %v2291, 30.0
          %v2310 = vadd.f32 %v2293, 30.0
          %v2311 = vadd.f32 %v2295, 30.0
          %v2312 = vsub.f32 %v2296, %v2088
          %v2313 = vsub.f32 %v2297, %v2089
          %v2314 = vsub.f32 %v2298, %v2090
          %v2315 = vsub.f32 %v2299, %v2091
          %v2316 = vsub.f32 %v2300, %v2092
          %v2317 = vsub.f32 %v2301, %v2093
          %v2318 = vsub.f32 %v2302, %v2094
          %v2319 = vsub.f32 %v2303, %v2095
          %v2320 = vsub.f32 %v2304, %v2096
          %v2321 = vsub.f32 %v2305, %v2097
          %v2322 = vsub.f32 %v2306, %v2098
          %v2323 = vsub.f32 %v2307, %v2099
          %v2324 = vsub.f32 %v2308, %v2100
          %v2325 = vsub.f32 %v2309, %v2101
          %v2326 = vsub.f32 %v2310, %v2102
          %v2327 = vsub.f32 %v2311, %v2103
          %2328 = vst.msk [vmem:[%s204] sm:$0xff] %vm1811, %v2312
          %2329 = vst.msk [vmem:[%s204 + $0x8] sm:$0xff] %vm1811, %v2313
          %2330 = vst.msk [vmem:[%s204 + $0x10] sm:$0xff] %vm1811, %v2314
          %2331 = vst.msk [vmem:[%s204 + $0x18] sm:$0xff] %vm1811, %v2315
          %2332 = vst.msk [vmem:[%s204 + $0x20] sm:$0xff] %vm1811, %v2316
          %2333 = vst.msk [vmem:[%s204 + $0x28] sm:$0xff] %vm1811, %v2317
          %2334 = vst.msk [vmem:[%s204 + $0x30] sm:$0xff] %vm1811, %v2318
          %2335 = vst.msk [vmem:[%s204 + $0x38] sm:$0xff] %vm1811, %v2319
          %2336 = vst.msk [vmem:[%s204 + $0x40] sm:$0xff] %vm1811, %v2320
          %2337 = vst.msk [vmem:[%s204 + $0x48] sm:$0xff] %vm1811, %v2321
          %2338 = vst.msk [vmem:[%s204 + $0x50] sm:$0xff] %vm1811, %v2322
          %2339 = vst.msk [vmem:[%s204 + $0x58] sm:$0xff] %vm1811, %v2323
          %2340 = vst.msk [vmem:[%s204 + $0x60] sm:$0xff] %vm1811, %v2324
          %2341 = vst.msk [vmem:[%s204 + $0x68] sm:$0xff] %vm1811, %v2325
          %2342 = vst.msk [vmem:[%s204 + $0x70] sm:$0xff] %vm1811, %v2326
          %2343 = vst.msk [vmem:[%s204 + $0x78] sm:$0xff] %vm1811, %v2327
        $region40: #{tpu_custom_call.1} parent=27 // pred_fallthru
          _
        %s2344 = smul.u32 16, %s20
        %p2345 = scmp.lt.s32.totalorder %s2344, 15
        %s2346 = scalar_select %p2345, %s2344, 15
        %s2347 = smul.addr %s2346, 8
        %s2348 = scalar_lea.vmem %s2, %s2347
        // Predicated region
        $region41: #{tpu_custom_call.1} parent=27 // pred_check
          %p2349 = pneg %p100
        $region42: #{tpu_custom_call.1} parent=27 // pred_check_branch
          %2351 = sbr.rel (%p2349) target = $region44
        $region43: #{tpu_custom_call.1} parent=27 // pred_region
          %s2352 = smul.u32 16, %s20
        $region44: #{tpu_custom_call.1} parent=27 // pred_fallthru
          _
        // Predicated region
        $region45: #{tpu_custom_call.1} parent=27 // pred_check
          %p2353 = pneg %p100
        $region46: #{tpu_custom_call.1} parent=27 // pred_check_branch
          %2355 = sbr.rel (%p2353) target = $region48
        $region47: #{tpu_custom_call.1} parent=27 // pred_region
          %s2356 = smul.u32 16, %s20
          %p2357 = scmp.lt.s32.totalorder %s2356, 15
          %s2358 = scalar_select %p2357, %s2356, 15
          %s2359 = smul.addr %s2358, 8
          %s2360 = scalar_lea.vmem %s2, %s2359
        $region48: #{tpu_custom_call.1} parent=27 // pred_fallthru
          _
      $region28: #{tpu_custom_call.1} parent=5 // pred_fallthru
        _
      %p2361 = scmp.le.s32.totalorder 2, %s11
      // Predicated region
      $region49: #{tpu_custom_call.1} parent=5 // pred_check
        %p2362 = pneg %p2361
      $region50: #{tpu_custom_call.1} parent=5 // pred_check_branch
        %2364 = sbr.rel (%p2362) target = $region52
      $region51: #{tpu_custom_call.1} parent=5 // pred_region
        %s2365 = ssub.s32 %s11, 2
      $region52: #{tpu_custom_call.1} parent=5 // pred_fallthru
        _
    $region6: #{tpu_custom_call.1} parent=1 // loop_footer
      %s15 = sadd.s32 1, %s11
    $region7: #{tpu_custom_call.1} parent=1 // loop_footer_branch
      %10 = sbr.rel target = $region3
    $region8: #{tpu_custom_call.1} parent=1 // loop_exit
      _
    %2366 = vsyncpa [#allocation5], 1
    %s2367 = scalar_lea.sflag [#allocation5], 1
    %2368 = vsyncpa %s2367, 1

</llo_original>
